<compile_context>
chip_gen: v5e
topology: v5e:2x2
jax: 0.10.0
libtpu: 0.0.40
codegen_flags: <defaults>
</compile_context>

<pallas_src>
import functools

import jax
import jax.numpy as jnp
from jax.experimental import pallas as pl
from jax.experimental.pallas import tpu as pltpu

DROPOUT = 0.1          # identity in eval mode
FLAVOURS = 17
RATIO = 0.6
NEG_VAL = -3.0e38      # "minus infinity" for masked max, finite to avoid NaN risk

# bias-slab row layout (see prepare_params)
_B_GCN = 0     # rows 0..6 : GCNConv biases
_B_POOL = 7    # rows 7..9 : pre-normalized TopK score vectors
_B_FC0 = 10
_B_FC1 = 11    # padded 32 -> 64
_B_FC2 = 12    # padded  2 -> 64
# weight-slab layout: rows 0..6 GCN W^T, 7 fc0 W^T, 8 fc1 W^T (padded), 9 fc2 W^T (padded)
_W_FC0, _W_FC1, _W_FC2 = 7, 8, 9


# ----------------------------- fused Pallas kernel -----------------------------

def _fused_forward_kernel(x_ref, adj_ref, batch_ref, w_ref, b_ref, out_ref,
                          *, num_graphs):
    f32 = jnp.float32
    n = x_ref.shape[0]

    x = x_ref[...]               # [N, 64] node features
    adj = adj_ref[...]           # [N, N] raw symmetric adjacency (no self loops)
    batch_col = batch_ref[...]   # [N, 1] graph id of each node (as f32)

    # Helper masks generated in-kernel (replaces 4 DMA'd NxN f32 inputs).
    row_ids = jax.lax.broadcasted_iota(jnp.int32, (n, n), 0)
    col_ids = jax.lax.broadcasted_iota(jnp.int32, (n, n), 1)
    eye = jnp.where(row_ids == col_ids, 1.0, 0.0)        # [N, N] f32 identity
    idx_lt = col_ids < row_ids                           # [N, N] bool: col < row

    def to_row(col):             # [N,1] -> [1,N] via XLU reduce (no relayout transpose)
        return jnp.sum(eye * col, axis=0, keepdims=True)

    batch_row = to_row(batch_col)                        # [1, N]
    same = jnp.where(batch_col == batch_row, 1.0, 0.0)   # [N, N] same-graph mask

    def norm_adj(mask_col, mask_row):
        # D^{-1/2} (A_live + I_live) D^{-1/2} restricted to live nodes
        a = adj * (mask_col * mask_row) + eye * mask_col
        deg = jnp.sum(a, axis=1, keepdims=True)
        dinv = jnp.where(deg > 0.0, jax.lax.rsqrt(jnp.maximum(deg, 1.0)), 0.0)
        return dinv * a * to_row(dinv)

    def gcn_relu(a_hat, h, layer):
        hw = jnp.dot(h, w_ref[layer], preferred_element_type=f32)
        out = (jnp.dot(a_hat, hw, preferred_element_type=f32)
               + b_ref[pl.ds(_B_GCN + layer, 1), :])
        return jnp.maximum(out, 0.0)

    mask_col = jnp.ones((n, 1), f32)
    mask_row = jnp.ones((1, n), f32)

    # ---- 4 initial GCNConv + relu (mask unchanged -> A_hat built once) ----
    a_hat = norm_adj(mask_col, mask_row)
    for layer in range(4):
        x = gcn_relu(a_hat, x, layer)

    # ---- 3x (GCNConv + relu + TopKPooling) ----
    for t in range(3):
        x = gcn_relu(a_hat, x, 4 + t)

        # TopKPooling: score = tanh((x . p)/||p||) (p pre-normalized); keep the
        # top ceil(ratio * n_live) nodes per graph, scale kept features by the
        # score, zero the rest (mask semantics; dead nodes never feed back).
        p_row = b_ref[pl.ds(_B_POOL + t, 1), :]                           # [1, 64]
        score_col = jnp.tanh(jnp.sum(x * p_row, axis=1, keepdims=True))   # [N, 1]
        score_row = to_row(score_col)                                     # [1, N]
        n_per = jnp.sum(same * mask_row, axis=1, keepdims=True)   # live nodes per graph
        k_per = jnp.ceil(RATIO * n_per)
        higher = jnp.where((score_row > score_col) |
                           ((score_row == score_col) & idx_lt), 1.0, 0.0)
        pairs = same * mask_row * mask_col
        rank = jnp.sum(pairs * higher, axis=1, keepdims=True)     # rank within own graph
        keep = jnp.where((mask_col > 0.0) & (rank < k_per), 1.0, 0.0)
        x = x * (score_col * keep)
        mask_col = keep
        mask_row = to_row(mask_col)
        if t < 2:                                                 # next conv needs new A_hat
            a_hat = norm_adj(mask_col, mask_row)

    # ---- global_max_pool kept in vregs (no scratch store/reload) ----
    rows = []
    for g in range(num_graphs):
        live = (batch_col == float(g)) & (mask_col > 0.0)         # [N, 1]
        vals = jnp.where(live, x, NEG_VAL)
        rows.append(jnp.max(vals, axis=0, keepdims=True))         # [1, 64]
    pooled = jnp.concatenate(rows, axis=0)                        # [B, 64]

    # ---- fused FC head: 64->64 relu, 64->32 relu, 32->2, log_softmax ----
    h = jnp.maximum(jnp.dot(pooled, w_ref[_W_FC0], preferred_element_type=f32)
                    + b_ref[pl.ds(_B_FC0, 1), :], 0.0)
    h = jnp.maximum(jnp.dot(h, w_ref[_W_FC1], preferred_element_type=f32)
                    + b_ref[pl.ds(_B_FC1, 1), :], 0.0)            # cols 32..63 stay 0
    logits = (jnp.dot(h, w_ref[_W_FC2], preferred_element_type=f32)
              + b_ref[pl.ds(_B_FC2, 1), :])[:, :2]
    s = logits - jnp.max(logits, axis=-1, keepdims=True)
    out_ref[...] = s - jnp.log(jnp.sum(jnp.exp(s), axis=-1, keepdims=True))


def fused_forward(x_emb, adj, batch_col, prep, num_graphs):
    kernel = functools.partial(_fused_forward_kernel, num_graphs=num_graphs)
    return pl.pallas_call(
        kernel,
        out_shape=jax.ShapeDtypeStruct((num_graphs, 2), jnp.float32),
        in_specs=[pl.BlockSpec(memory_space=pltpu.MemorySpace.VMEM)] * 5,
        out_specs=pl.BlockSpec(memory_space=pltpu.MemorySpace.VMEM),
    )(x_emb, adj, batch_col, prep["w_slab"], prep["b_slab"])


# ------------------------------ jitted JAX glue ----------------------------------

@functools.partial(jax.jit, static_argnames=("num_graphs",))
def model_forward(prep, x_idx, edge_index, batch, num_graphs):
    n = x_idx.shape[0]
    x = prep["embed"][x_idx]                                     # Embedding lookup
    src, dst = edge_index[0], edge_index[1]
    # MXU-friendly dense adjacency build (no serialized scatter): adj[dst, src] += 1
    src_oh = jax.nn.one_hot(src, n, dtype=jnp.float32)           # [E, N]
    dst_oh = jax.nn.one_hot(dst, n, dtype=jnp.float32)           # [E, N]
    adj = jnp.dot(dst_oh.T, src_oh)                              # [N, N]
    batch_col = batch.astype(jnp.float32)[:, None]               # [N, 1]
    return fused_forward(x, adj, batch_col, prep, num_graphs)


# --------------------------- params: init + one-time prep -------------------------

def init_params(key):
    ks = iter(jax.random.split(key, 40))

    def lin(cout, cin):
        w = jax.random.normal(next(ks), (cout, cin), jnp.float32) * 0.1
        b = jax.random.normal(next(ks), (cout,), jnp.float32) * 0.01
        return (w, b)

    return {
        "embed": jax.random.normal(next(ks), (FLAVOURS, 64), jnp.float32) * 0.1,
        "initial_conv": [lin(64, 64) for _ in range(4)],
        "conv": [lin(64, 64) for _ in range(3)],
        "pool": [jax.random.normal(next(ks), (64,), jnp.float32) * 0.1
                 for _ in range(3)],
        "fc0": lin(64, 64),
        "fc1": lin(32, 64),
        "fc2": lin(2, 32),
    }


def prepare_params(params):
    """One-time re-layout: transpose weights to [Cin,Cout], pack everything
    into two lane-dense slabs (fewer HBM->VMEM DMAs at launch)."""
    gcn_layers = params["initial_conv"] + params["conv"]
    (w0, b0), (w1, b1), (w2, b2) = params["fc0"], params["fc1"], params["fc2"]

    w_slab = jnp.stack(
        [w.T for w, _ in gcn_layers]                    # 7 x [64, 64]
        + [w0.T,                                        # [64, 64]
           jnp.pad(w1.T, ((0, 0), (0, 32))),            # [64, 32] -> [64, 64]
           jnp.pad(w2.T, ((0, 32), (0, 62)))])          # [32, 2]  -> [64, 64]

    pool_rows = [p / jnp.sqrt(jnp.sum(p * p)) for p in params["pool"]]
    b_rows = ([b for _, b in gcn_layers]                # rows 0..6
              + pool_rows                               # rows 7..9
              + [b0,                                    # row 10
                 jnp.pad(b1, (0, 32)),                  # row 11
                 jnp.pad(b2, (0, 62))]                  # row 12
              + [jnp.zeros((64,), jnp.float32)] * 3)    # pad to 16 rows
    b_slab = jnp.stack(b_rows)                          # [16, 64]

    return {"embed": params["embed"], "w_slab": w_slab, "b_slab": b_slab}


if __name__ == "__main__":
    key = jax.random.PRNGKey(0)
    pkey, xkey = jax.random.split(key)
    params = init_params(pkey)
    prep = prepare_params(params)

    # Two small graphs: 7-node cycle(+chord) and 5-node ring -> 12 nodes total.
    num_graphs = 2
    n = 12
    x_idx = jax.random.randint(xkey, (n,), 0, FLAVOURS)
    und = [(0, 1), (1, 2), (2, 3), (3, 4), (4, 5), (5, 6), (6, 0), (1, 4),
           (7, 8), (8, 9), (9, 10), (10, 11), (11, 7)]
    src = [a for a, b in und] + [b for a, b in und]
    dst = [b for a, b in und] + [a for a, b in und]
    edge_index = jnp.array([src, dst], dtype=jnp.int32)       # [2, 26]
    batch = jnp.array([0] * 7 + [1] * 5, dtype=jnp.int32)     # [12]

    out = model_forward(prep, x_idx, edge_index, batch, num_graphs)
    out = jax.block_until_ready(out)

    assert out.shape == (num_graphs, 2)
    assert bool(jnp.all(jnp.isfinite(out)))
    # log_softmax rows must exponentiate to ~1
    assert bool(jnp.all(jnp.abs(jnp.sum(jnp.exp(out), axis=-1) - 1.0) < 1e-3))
    print("KERNEL_OK")
</pallas_src>

<mosaic_0001>
module attributes {stable_mosaic.version = 11 : i64} {
  func.func @_fused_forward_kernel(%arg0: memref<12x64xf32, #tpu.memory_space<vmem>>, %arg1: memref<12x12xf32, #tpu.memory_space<vmem>>, %arg2: memref<12x1xf32, #tpu.memory_space<vmem>>, %arg3: memref<10x64x64xf32, #tpu.memory_space<vmem>>, %arg4: memref<16x64xf32, #tpu.memory_space<vmem>>, %arg5: memref<2x2xf32, #tpu.memory_space<vmem>>) attributes {dimension_semantics = [], scalar_prefetch = 0 : i64, scratch_operands = 0 : i64, tpu.core_type = #tpu.core_type<tc>} {
    %c0 = arith.constant 0 : index
    %c0_0 = arith.constant 0 : index
    %0 = vector.load %arg0[%c0, %c0_0] : memref<12x64xf32, #tpu.memory_space<vmem>>, vector<12x64xf32>
    %c0_1 = arith.constant 0 : index
    %c0_2 = arith.constant 0 : index
    %1 = vector.load %arg1[%c0_1, %c0_2] : memref<12x12xf32, #tpu.memory_space<vmem>>, vector<12x12xf32>
    %c0_3 = arith.constant 0 : index
    %c0_4 = arith.constant 0 : index
    %2 = vector.load %arg2[%c0_3, %c0_4] : memref<12x1xf32, #tpu.memory_space<vmem>>, vector<12x1xf32>
    %3 = tpu.iota {dimensions = array<i32: 0>} : vector<12x12xi32>
    %4 = tpu.iota {dimensions = array<i32: 1>} : vector<12x12xi32>
    %5 = arith.cmpi eq, %3, %4 : vector<12x12xi32>
    %cst = arith.constant 1.000000e+00 : f32
    %cst_5 = arith.constant 0.000000e+00 : f32
    %6 = vector.broadcast %cst : f32 to vector<12x12xf32>
    %7 = vector.broadcast %cst_5 : f32 to vector<12x12xf32>
    %8 = arith.select %5, %6, %7 : vector<12x12xi1>, vector<12x12xf32>
    %9 = arith.cmpi slt, %4, %3 : vector<12x12xi32>
    %10 = vector.broadcast %2 : vector<12x1xf32> to vector<12x12xf32>
    %11 = arith.mulf %8, %10 : vector<12x12xf32>
    %cst_6 = arith.constant dense<0.000000e+00> : vector<12xf32>
    %12 = vector.multi_reduction <add>, %11, %cst_6 [0] : vector<12x12xf32> to vector<12xf32>
    %13 = vector.shape_cast %12 : vector<12xf32> to vector<1x12xf32>
    %14 = vector.broadcast %2 : vector<12x1xf32> to vector<12x12xf32>
    %15 = vector.broadcast %13 : vector<1x12xf32> to vector<12x12xf32>
    %16 = arith.cmpf oeq, %14, %15 : vector<12x12xf32>
    %cst_7 = arith.constant 1.000000e+00 : f32
    %cst_8 = arith.constant 0.000000e+00 : f32
    %17 = vector.broadcast %cst_7 : f32 to vector<12x12xf32>
    %18 = vector.broadcast %cst_8 : f32 to vector<12x12xf32>
    %19 = arith.select %16, %17, %18 : vector<12x12xi1>, vector<12x12xf32>
    %cst_9 = arith.constant 1.000000e+00 : f32
    %20 = vector.broadcast %cst_9 : f32 to vector<12x1xf32>
    %cst_10 = arith.constant 1.000000e+00 : f32
    %21 = vector.broadcast %cst_10 : f32 to vector<1x12xf32>
    %22 = vector.broadcast %20 : vector<12x1xf32> to vector<12x12xf32>
    %23 = vector.broadcast %21 : vector<1x12xf32> to vector<12x12xf32>
    %24 = arith.mulf %22, %23 : vector<12x12xf32>
    %25 = arith.mulf %1, %24 : vector<12x12xf32>
    %26 = vector.broadcast %20 : vector<12x1xf32> to vector<12x12xf32>
    %27 = arith.mulf %8, %26 : vector<12x12xf32>
    %28 = arith.addf %25, %27 : vector<12x12xf32>
    %cst_11 = arith.constant dense<0.000000e+00> : vector<12xf32>
    %29 = vector.multi_reduction <add>, %28, %cst_11 [1] : vector<12x12xf32> to vector<12xf32>
    %30 = vector.shape_cast %29 : vector<12xf32> to vector<12x1xf32>
    %cst_12 = arith.constant 0.000000e+00 : f32
    %31 = vector.broadcast %cst_12 : f32 to vector<12x1xf32>
    %32 = arith.cmpf ogt, %30, %31 : vector<12x1xf32>
    %cst_13 = arith.constant 1.000000e+00 : f32
    %33 = vector.broadcast %cst_13 : f32 to vector<12x1xf32>
    %34 = arith.maximumf %30, %33 : vector<12x1xf32>
    %35 = math.rsqrt %34 : vector<12x1xf32>
    %cst_14 = arith.constant 0.000000e+00 : f32
    %36 = vector.broadcast %cst_14 : f32 to vector<12x1xf32>
    %37 = arith.select %32, %35, %36 : vector<12x1xi1>, vector<12x1xf32>
    %38 = vector.broadcast %37 : vector<12x1xf32> to vector<12x12xf32>
    %39 = arith.mulf %38, %28 : vector<12x12xf32>
    %40 = vector.broadcast %37 : vector<12x1xf32> to vector<12x12xf32>
    %41 = arith.mulf %8, %40 : vector<12x12xf32>
    %cst_15 = arith.constant dense<0.000000e+00> : vector<12xf32>
    %42 = vector.multi_reduction <add>, %41, %cst_15 [0] : vector<12x12xf32> to vector<12xf32>
    %43 = vector.shape_cast %42 : vector<12xf32> to vector<1x12xf32>
    %44 = vector.broadcast %43 : vector<1x12xf32> to vector<12x12xf32>
    %45 = arith.mulf %39, %44 : vector<12x12xf32>
    %c0_16 = arith.constant 0 : index
    %c0_17 = arith.constant 0 : index
    %c0_18 = arith.constant 0 : index
    %46 = vector.load %arg3[%c0_16, %c0_17, %c0_18] : memref<10x64x64xf32, #tpu.memory_space<vmem>>, vector<1x64x64xf32>
    %47 = vector.shape_cast %46 : vector<1x64x64xf32> to vector<64x64xf32>
    %cst_19 = arith.constant dense<0.000000e+00> : vector<12x64xf32>
    %48 = tpu.matmul %0, %47, %cst_19 {dimension_numbers = #tpu.dot_dimension_numbers<[1], [0], [0], [1], [0, 0, 1, 1], [], []>} : vector<12x64xf32>, vector<64x64xf32>, vector<12x64xf32> -> vector<12x64xf32>
    %cst_20 = arith.constant dense<0.000000e+00> : vector<12x64xf32>
    %49 = tpu.matmul %45, %48, %cst_20 {dimension_numbers = #tpu.dot_dimension_numbers<[1], [0], [0], [1], [0, 0, 1, 1], [], []>} : vector<12x12xf32>, vector<12x64xf32>, vector<12x64xf32> -> vector<12x64xf32>
    %c0_21 = arith.constant 0 : index
    %c0_22 = arith.constant 0 : index
    %50 = vector.load %arg4[%c0_21, %c0_22] : memref<16x64xf32, #tpu.memory_space<vmem>>, vector<1x64xf32>
    %51 = vector.broadcast %50 : vector<1x64xf32> to vector<12x64xf32>
    %52 = arith.addf %49, %51 : vector<12x64xf32>
    %cst_23 = arith.constant 0.000000e+00 : f32
    %53 = vector.broadcast %cst_23 : f32 to vector<12x64xf32>
    %54 = arith.maximumf %52, %53 : vector<12x64xf32>
    %c1 = arith.constant 1 : index
    %c0_24 = arith.constant 0 : index
    %c0_25 = arith.constant 0 : index
    %55 = vector.load %arg3[%c1, %c0_24, %c0_25] : memref<10x64x64xf32, #tpu.memory_space<vmem>>, vector<1x64x64xf32>
    %56 = vector.shape_cast %55 : vector<1x64x64xf32> to vector<64x64xf32>
    %cst_26 = arith.constant dense<0.000000e+00> : vector<12x64xf32>
    %57 = tpu.matmul %54, %56, %cst_26 {dimension_numbers = #tpu.dot_dimension_numbers<[1], [0], [0], [1], [0, 0, 1, 1], [], []>} : vector<12x64xf32>, vector<64x64xf32>, vector<12x64xf32> -> vector<12x64xf32>
    %cst_27 = arith.constant dense<0.000000e+00> : vector<12x64xf32>
    %58 = tpu.matmul %45, %57, %cst_27 {dimension_numbers = #tpu.dot_dimension_numbers<[1], [0], [0], [1], [0, 0, 1, 1], [], []>} : vector<12x12xf32>, vector<12x64xf32>, vector<12x64xf32> -> vector<12x64xf32>
    %c1_28 = arith.constant 1 : index
    %c0_29 = arith.constant 0 : index
    %59 = vector.load %arg4[%c1_28, %c0_29] : memref<16x64xf32, #tpu.memory_space<vmem>>, vector<1x64xf32>
    %60 = vector.broadcast %59 : vector<1x64xf32> to vector<12x64xf32>
    %61 = arith.addf %58, %60 : vector<12x64xf32>
    %cst_30 = arith.constant 0.000000e+00 : f32
    %62 = vector.broadcast %cst_30 : f32 to vector<12x64xf32>
    %63 = arith.maximumf %61, %62 : vector<12x64xf32>
    %c2 = arith.constant 2 : index
    %c0_31 = arith.constant 0 : index
    %c0_32 = arith.constant 0 : index
    %64 = vector.load %arg3[%c2, %c0_31, %c0_32] : memref<10x64x64xf32, #tpu.memory_space<vmem>>, vector<1x64x64xf32>
    %65 = vector.shape_cast %64 : vector<1x64x64xf32> to vector<64x64xf32>
    %cst_33 = arith.constant dense<0.000000e+00> : vector<12x64xf32>
    %66 = tpu.matmul %63, %65, %cst_33 {dimension_numbers = #tpu.dot_dimension_numbers<[1], [0], [0], [1], [0, 0, 1, 1], [], []>} : vector<12x64xf32>, vector<64x64xf32>, vector<12x64xf32> -> vector<12x64xf32>
    %cst_34 = arith.constant dense<0.000000e+00> : vector<12x64xf32>
    %67 = tpu.matmul %45, %66, %cst_34 {dimension_numbers = #tpu.dot_dimension_numbers<[1], [0], [0], [1], [0, 0, 1, 1], [], []>} : vector<12x12xf32>, vector<12x64xf32>, vector<12x64xf32> -> vector<12x64xf32>
    %c2_35 = arith.constant 2 : index
    %c0_36 = arith.constant 0 : index
    %68 = vector.load %arg4[%c2_35, %c0_36] : memref<16x64xf32, #tpu.memory_space<vmem>>, vector<1x64xf32>
    %69 = vector.broadcast %68 : vector<1x64xf32> to vector<12x64xf32>
    %70 = arith.addf %67, %69 : vector<12x64xf32>
    %cst_37 = arith.constant 0.000000e+00 : f32
    %71 = vector.broadcast %cst_37 : f32 to vector<12x64xf32>
    %72 = arith.maximumf %70, %71 : vector<12x64xf32>
    %c3 = arith.constant 3 : index
    %c0_38 = arith.constant 0 : index
    %c0_39 = arith.constant 0 : index
    %73 = vector.load %arg3[%c3, %c0_38, %c0_39] : memref<10x64x64xf32, #tpu.memory_space<vmem>>, vector<1x64x64xf32>
    %74 = vector.shape_cast %73 : vector<1x64x64xf32> to vector<64x64xf32>
    %cst_40 = arith.constant dense<0.000000e+00> : vector<12x64xf32>
    %75 = tpu.matmul %72, %74, %cst_40 {dimension_numbers = #tpu.dot_dimension_numbers<[1], [0], [0], [1], [0, 0, 1, 1], [], []>} : vector<12x64xf32>, vector<64x64xf32>, vector<12x64xf32> -> vector<12x64xf32>
    %cst_41 = arith.constant dense<0.000000e+00> : vector<12x64xf32>
    %76 = tpu.matmul %45, %75, %cst_41 {dimension_numbers = #tpu.dot_dimension_numbers<[1], [0], [0], [1], [0, 0, 1, 1], [], []>} : vector<12x12xf32>, vector<12x64xf32>, vector<12x64xf32> -> vector<12x64xf32>
    %c3_42 = arith.constant 3 : index
    %c0_43 = arith.constant 0 : index
    %77 = vector.load %arg4[%c3_42, %c0_43] : memref<16x64xf32, #tpu.memory_space<vmem>>, vector<1x64xf32>
    %78 = vector.broadcast %77 : vector<1x64xf32> to vector<12x64xf32>
    %79 = arith.addf %76, %78 : vector<12x64xf32>
    %cst_44 = arith.constant 0.000000e+00 : f32
    %80 = vector.broadcast %cst_44 : f32 to vector<12x64xf32>
    %81 = arith.maximumf %79, %80 : vector<12x64xf32>
    %c4 = arith.constant 4 : index
    %c0_45 = arith.constant 0 : index
    %c0_46 = arith.constant 0 : index
    %82 = vector.load %arg3[%c4, %c0_45, %c0_46] : memref<10x64x64xf32, #tpu.memory_space<vmem>>, vector<1x64x64xf32>
    %83 = vector.shape_cast %82 : vector<1x64x64xf32> to vector<64x64xf32>
    %cst_47 = arith.constant dense<0.000000e+00> : vector<12x64xf32>
    %84 = tpu.matmul %81, %83, %cst_47 {dimension_numbers = #tpu.dot_dimension_numbers<[1], [0], [0], [1], [0, 0, 1, 1], [], []>} : vector<12x64xf32>, vector<64x64xf32>, vector<12x64xf32> -> vector<12x64xf32>
    %cst_48 = arith.constant dense<0.000000e+00> : vector<12x64xf32>
    %85 = tpu.matmul %45, %84, %cst_48 {dimension_numbers = #tpu.dot_dimension_numbers<[1], [0], [0], [1], [0, 0, 1, 1], [], []>} : vector<12x12xf32>, vector<12x64xf32>, vector<12x64xf32> -> vector<12x64xf32>
    %c4_49 = arith.constant 4 : index
    %c0_50 = arith.constant 0 : index
    %86 = vector.load %arg4[%c4_49, %c0_50] : memref<16x64xf32, #tpu.memory_space<vmem>>, vector<1x64xf32>
    %87 = vector.broadcast %86 : vector<1x64xf32> to vector<12x64xf32>
    %88 = arith.addf %85, %87 : vector<12x64xf32>
    %cst_51 = arith.constant 0.000000e+00 : f32
    %89 = vector.broadcast %cst_51 : f32 to vector<12x64xf32>
    %90 = arith.maximumf %88, %89 : vector<12x64xf32>
    %c7 = arith.constant 7 : index
    %c0_52 = arith.constant 0 : index
    %91 = vector.load %arg4[%c7, %c0_52] : memref<16x64xf32, #tpu.memory_space<vmem>>, vector<1x64xf32>
    %92 = vector.broadcast %91 : vector<1x64xf32> to vector<12x64xf32>
    %93 = arith.mulf %90, %92 : vector<12x64xf32>
    %cst_53 = arith.constant dense<0.000000e+00> : vector<12xf32>
    %94 = vector.multi_reduction <add>, %93, %cst_53 [1] : vector<12x64xf32> to vector<12xf32>
    %95 = vector.shape_cast %94 : vector<12xf32> to vector<12x1xf32>
    %96 = math.tanh %95 : vector<12x1xf32>
    %97 = vector.broadcast %96 : vector<12x1xf32> to vector<12x12xf32>
    %98 = arith.mulf %8, %97 : vector<12x12xf32>
    %cst_54 = arith.constant dense<0.000000e+00> : vector<12xf32>
    %99 = vector.multi_reduction <add>, %98, %cst_54 [0] : vector<12x12xf32> to vector<12xf32>
    %100 = vector.shape_cast %99 : vector<12xf32> to vector<1x12xf32>
    %101 = vector.broadcast %21 : vector<1x12xf32> to vector<12x12xf32>
    %102 = arith.mulf %19, %101 : vector<12x12xf32>
    %cst_55 = arith.constant dense<0.000000e+00> : vector<12xf32>
    %103 = vector.multi_reduction <add>, %102, %cst_55 [1] : vector<12x12xf32> to vector<12xf32>
    %104 = vector.shape_cast %103 : vector<12xf32> to vector<12x1xf32>
    %cst_56 = arith.constant 6.000000e-01 : f32
    %105 = vector.broadcast %cst_56 : f32 to vector<12x1xf32>
    %106 = arith.mulf %105, %104 : vector<12x1xf32>
    %107 = math.ceil %106 : vector<12x1xf32>
    %108 = vector.broadcast %100 : vector<1x12xf32> to vector<12x12xf32>
    %109 = vector.broadcast %96 : vector<12x1xf32> to vector<12x12xf32>
    %110 = arith.cmpf ogt, %108, %109 : vector<12x12xf32>
    %111 = vector.broadcast %100 : vector<1x12xf32> to vector<12x12xf32>
    %112 = vector.broadcast %96 : vector<12x1xf32> to vector<12x12xf32>
    %113 = arith.cmpf oeq, %111, %112 : vector<12x12xf32>
    %114 = arith.andi %113, %9 : vector<12x12xi1>
    %115 = arith.ori %110, %114 : vector<12x12xi1>
    %cst_57 = arith.constant 1.000000e+00 : f32
    %cst_58 = arith.constant 0.000000e+00 : f32
    %116 = vector.broadcast %cst_57 : f32 to vector<12x12xf32>
    %117 = vector.broadcast %cst_58 : f32 to vector<12x12xf32>
    %118 = arith.select %115, %116, %117 : vector<12x12xi1>, vector<12x12xf32>
    %119 = vector.broadcast %21 : vector<1x12xf32> to vector<12x12xf32>
    %120 = arith.mulf %19, %119 : vector<12x12xf32>
    %121 = vector.broadcast %20 : vector<12x1xf32> to vector<12x12xf32>
    %122 = arith.mulf %120, %121 : vector<12x12xf32>
    %123 = arith.mulf %122, %118 : vector<12x12xf32>
    %cst_59 = arith.constant dense<0.000000e+00> : vector<12xf32>
    %124 = vector.multi_reduction <add>, %123, %cst_59 [1] : vector<12x12xf32> to vector<12xf32>
    %125 = vector.shape_cast %124 : vector<12xf32> to vector<12x1xf32>
    %cst_60 = arith.constant 0.000000e+00 : f32
    %126 = vector.broadcast %cst_60 : f32 to vector<12x1xf32>
    %127 = arith.cmpf ogt, %20, %126 : vector<12x1xf32>
    %128 = arith.cmpf olt, %125, %107 : vector<12x1xf32>
    %129 = arith.andi %127, %128 : vector<12x1xi1>
    %cst_61 = arith.constant 1.000000e+00 : f32
    %cst_62 = arith.constant 0.000000e+00 : f32
    %130 = vector.broadcast %cst_61 : f32 to vector<12x1xf32>
    %131 = vector.broadcast %cst_62 : f32 to vector<12x1xf32>
    %132 = arith.select %129, %130, %131 : vector<12x1xi1>, vector<12x1xf32>
    %133 = arith.mulf %96, %132 : vector<12x1xf32>
    %134 = vector.broadcast %133 : vector<12x1xf32> to vector<12x64xf32>
    %135 = arith.mulf %90, %134 : vector<12x64xf32>
    %136 = vector.broadcast %132 : vector<12x1xf32> to vector<12x12xf32>
    %137 = arith.mulf %8, %136 : vector<12x12xf32>
    %cst_63 = arith.constant dense<0.000000e+00> : vector<12xf32>
    %138 = vector.multi_reduction <add>, %137, %cst_63 [0] : vector<12x12xf32> to vector<12xf32>
    %139 = vector.shape_cast %138 : vector<12xf32> to vector<1x12xf32>
    %140 = vector.broadcast %132 : vector<12x1xf32> to vector<12x12xf32>
    %141 = vector.broadcast %139 : vector<1x12xf32> to vector<12x12xf32>
    %142 = arith.mulf %140, %141 : vector<12x12xf32>
    %143 = arith.mulf %1, %142 : vector<12x12xf32>
    %144 = vector.broadcast %132 : vector<12x1xf32> to vector<12x12xf32>
    %145 = arith.mulf %8, %144 : vector<12x12xf32>
    %146 = arith.addf %143, %145 : vector<12x12xf32>
    %cst_64 = arith.constant dense<0.000000e+00> : vector<12xf32>
    %147 = vector.multi_reduction <add>, %146, %cst_64 [1] : vector<12x12xf32> to vector<12xf32>
    %148 = vector.shape_cast %147 : vector<12xf32> to vector<12x1xf32>
    %cst_65 = arith.constant 0.000000e+00 : f32
    %149 = vector.broadcast %cst_65 : f32 to vector<12x1xf32>
    %150 = arith.cmpf ogt, %148, %149 : vector<12x1xf32>
    %cst_66 = arith.constant 1.000000e+00 : f32
    %151 = vector.broadcast %cst_66 : f32 to vector<12x1xf32>
    %152 = arith.maximumf %148, %151 : vector<12x1xf32>
    %153 = math.rsqrt %152 : vector<12x1xf32>
    %cst_67 = arith.constant 0.000000e+00 : f32
    %154 = vector.broadcast %cst_67 : f32 to vector<12x1xf32>
    %155 = arith.select %150, %153, %154 : vector<12x1xi1>, vector<12x1xf32>
    %156 = vector.broadcast %155 : vector<12x1xf32> to vector<12x12xf32>
    %157 = arith.mulf %156, %146 : vector<12x12xf32>
    %158 = vector.broadcast %155 : vector<12x1xf32> to vector<12x12xf32>
    %159 = arith.mulf %8, %158 : vector<12x12xf32>
    %cst_68 = arith.constant dense<0.000000e+00> : vector<12xf32>
    %160 = vector.multi_reduction <add>, %159, %cst_68 [0] : vector<12x12xf32> to vector<12xf32>
    %161 = vector.shape_cast %160 : vector<12xf32> to vector<1x12xf32>
    %162 = vector.broadcast %161 : vector<1x12xf32> to vector<12x12xf32>
    %163 = arith.mulf %157, %162 : vector<12x12xf32>
    %c5 = arith.constant 5 : index
    %c0_69 = arith.constant 0 : index
    %c0_70 = arith.constant 0 : index
    %164 = vector.load %arg3[%c5, %c0_69, %c0_70] : memref<10x64x64xf32, #tpu.memory_space<vmem>>, vector<1x64x64xf32>
    %165 = vector.shape_cast %164 : vector<1x64x64xf32> to vector<64x64xf32>
    %cst_71 = arith.constant dense<0.000000e+00> : vector<12x64xf32>
    %166 = tpu.matmul %135, %165, %cst_71 {dimension_numbers = #tpu.dot_dimension_numbers<[1], [0], [0], [1], [0, 0, 1, 1], [], []>} : vector<12x64xf32>, vector<64x64xf32>, vector<12x64xf32> -> vector<12x64xf32>
    %cst_72 = arith.constant dense<0.000000e+00> : vector<12x64xf32>
    %167 = tpu.matmul %163, %166, %cst_72 {dimension_numbers = #tpu.dot_dimension_numbers<[1], [0], [0], [1], [0, 0, 1, 1], [], []>} : vector<12x12xf32>, vector<12x64xf32>, vector<12x64xf32> -> vector<12x64xf32>
    %c5_73 = arith.constant 5 : index
    %c0_74 = arith.constant 0 : index
    %168 = vector.load %arg4[%c5_73, %c0_74] : memref<16x64xf32, #tpu.memory_space<vmem>>, vector<1x64xf32>
    %169 = vector.broadcast %168 : vector<1x64xf32> to vector<12x64xf32>
    %170 = arith.addf %167, %169 : vector<12x64xf32>
    %cst_75 = arith.constant 0.000000e+00 : f32
    %171 = vector.broadcast %cst_75 : f32 to vector<12x64xf32>
    %172 = arith.maximumf %170, %171 : vector<12x64xf32>
    %c8 = arith.constant 8 : index
    %c0_76 = arith.constant 0 : index
    %173 = vector.load %arg4[%c8, %c0_76] : memref<16x64xf32, #tpu.memory_space<vmem>>, vector<1x64xf32>
    %174 = vector.broadcast %173 : vector<1x64xf32> to vector<12x64xf32>
    %175 = arith.mulf %172, %174 : vector<12x64xf32>
    %cst_77 = arith.constant dense<0.000000e+00> : vector<12xf32>
    %176 = vector.multi_reduction <add>, %175, %cst_77 [1] : vector<12x64xf32> to vector<12xf32>
    %177 = vector.shape_cast %176 : vector<12xf32> to vector<12x1xf32>
    %178 = math.tanh %177 : vector<12x1xf32>
    %179 = vector.broadcast %178 : vector<12x1xf32> to vector<12x12xf32>
    %180 = arith.mulf %8, %179 : vector<12x12xf32>
    %cst_78 = arith.constant dense<0.000000e+00> : vector<12xf32>
    %181 = vector.multi_reduction <add>, %180, %cst_78 [0] : vector<12x12xf32> to vector<12xf32>
    %182 = vector.shape_cast %181 : vector<12xf32> to vector<1x12xf32>
    %183 = vector.broadcast %139 : vector<1x12xf32> to vector<12x12xf32>
    %184 = arith.mulf %19, %183 : vector<12x12xf32>
    %cst_79 = arith.constant dense<0.000000e+00> : vector<12xf32>
    %185 = vector.multi_reduction <add>, %184, %cst_79 [1] : vector<12x12xf32> to vector<12xf32>
    %186 = vector.shape_cast %185 : vector<12xf32> to vector<12x1xf32>
    %cst_80 = arith.constant 6.000000e-01 : f32
    %187 = vector.broadcast %cst_80 : f32 to vector<12x1xf32>
    %188 = arith.mulf %187, %186 : vector<12x1xf32>
    %189 = math.ceil %188 : vector<12x1xf32>
    %190 = vector.broadcast %182 : vector<1x12xf32> to vector<12x12xf32>
    %191 = vector.broadcast %178 : vector<12x1xf32> to vector<12x12xf32>
    %192 = arith.cmpf ogt, %190, %191 : vector<12x12xf32>
    %193 = vector.broadcast %182 : vector<1x12xf32> to vector<12x12xf32>
    %194 = vector.broadcast %178 : vector<12x1xf32> to vector<12x12xf32>
    %195 = arith.cmpf oeq, %193, %194 : vector<12x12xf32>
    %196 = arith.andi %195, %9 : vector<12x12xi1>
    %197 = arith.ori %192, %196 : vector<12x12xi1>
    %cst_81 = arith.constant 1.000000e+00 : f32
    %cst_82 = arith.constant 0.000000e+00 : f32
    %198 = vector.broadcast %cst_81 : f32 to vector<12x12xf32>
    %199 = vector.broadcast %cst_82 : f32 to vector<12x12xf32>
    %200 = arith.select %197, %198, %199 : vector<12x12xi1>, vector<12x12xf32>
    %201 = vector.broadcast %139 : vector<1x12xf32> to vector<12x12xf32>
    %202 = arith.mulf %19, %201 : vector<12x12xf32>
    %203 = vector.broadcast %132 : vector<12x1xf32> to vector<12x12xf32>
    %204 = arith.mulf %202, %203 : vector<12x12xf32>
    %205 = arith.mulf %204, %200 : vector<12x12xf32>
    %cst_83 = arith.constant dense<0.000000e+00> : vector<12xf32>
    %206 = vector.multi_reduction <add>, %205, %cst_83 [1] : vector<12x12xf32> to vector<12xf32>
    %207 = vector.shape_cast %206 : vector<12xf32> to vector<12x1xf32>
    %cst_84 = arith.constant 0.000000e+00 : f32
    %208 = vector.broadcast %cst_84 : f32 to vector<12x1xf32>
    %209 = arith.cmpf ogt, %132, %208 : vector<12x1xf32>
    %210 = arith.cmpf olt, %207, %189 : vector<12x1xf32>
    %211 = arith.andi %209, %210 : vector<12x1xi1>
    %cst_85 = arith.constant 1.000000e+00 : f32
    %cst_86 = arith.constant 0.000000e+00 : f32
    %212 = vector.broadcast %cst_85 : f32 to vector<12x1xf32>
    %213 = vector.broadcast %cst_86 : f32 to vector<12x1xf32>
    %214 = arith.select %211, %212, %213 : vector<12x1xi1>, vector<12x1xf32>
    %215 = arith.mulf %178, %214 : vector<12x1xf32>
    %216 = vector.broadcast %215 : vector<12x1xf32> to vector<12x64xf32>
    %217 = arith.mulf %172, %216 : vector<12x64xf32>
    %218 = vector.broadcast %214 : vector<12x1xf32> to vector<12x12xf32>
    %219 = arith.mulf %8, %218 : vector<12x12xf32>
    %cst_87 = arith.constant dense<0.000000e+00> : vector<12xf32>
    %220 = vector.multi_reduction <add>, %219, %cst_87 [0] : vector<12x12xf32> to vector<12xf32>
    %221 = vector.shape_cast %220 : vector<12xf32> to vector<1x12xf32>
    %222 = vector.broadcast %214 : vector<12x1xf32> to vector<12x12xf32>
    %223 = vector.broadcast %221 : vector<1x12xf32> to vector<12x12xf32>
    %224 = arith.mulf %222, %223 : vector<12x12xf32>
    %225 = arith.mulf %1, %224 : vector<12x12xf32>
    %226 = vector.broadcast %214 : vector<12x1xf32> to vector<12x12xf32>
    %227 = arith.mulf %8, %226 : vector<12x12xf32>
    %228 = arith.addf %225, %227 : vector<12x12xf32>
    %cst_88 = arith.constant dense<0.000000e+00> : vector<12xf32>
    %229 = vector.multi_reduction <add>, %228, %cst_88 [1] : vector<12x12xf32> to vector<12xf32>
    %230 = vector.shape_cast %229 : vector<12xf32> to vector<12x1xf32>
    %cst_89 = arith.constant 0.000000e+00 : f32
    %231 = vector.broadcast %cst_89 : f32 to vector<12x1xf32>
    %232 = arith.cmpf ogt, %230, %231 : vector<12x1xf32>
    %cst_90 = arith.constant 1.000000e+00 : f32
    %233 = vector.broadcast %cst_90 : f32 to vector<12x1xf32>
    %234 = arith.maximumf %230, %233 : vector<12x1xf32>
    %235 = math.rsqrt %234 : vector<12x1xf32>
    %cst_91 = arith.constant 0.000000e+00 : f32
    %236 = vector.broadcast %cst_91 : f32 to vector<12x1xf32>
    %237 = arith.select %232, %235, %236 : vector<12x1xi1>, vector<12x1xf32>
    %238 = vector.broadcast %237 : vector<12x1xf32> to vector<12x12xf32>
    %239 = arith.mulf %238, %228 : vector<12x12xf32>
    %240 = vector.broadcast %237 : vector<12x1xf32> to vector<12x12xf32>
    %241 = arith.mulf %8, %240 : vector<12x12xf32>
    %cst_92 = arith.constant dense<0.000000e+00> : vector<12xf32>
    %242 = vector.multi_reduction <add>, %241, %cst_92 [0] : vector<12x12xf32> to vector<12xf32>
    %243 = vector.shape_cast %242 : vector<12xf32> to vector<1x12xf32>
    %244 = vector.broadcast %243 : vector<1x12xf32> to vector<12x12xf32>
    %245 = arith.mulf %239, %244 : vector<12x12xf32>
    %c6 = arith.constant 6 : index
    %c0_93 = arith.constant 0 : index
    %c0_94 = arith.constant 0 : index
    %246 = vector.load %arg3[%c6, %c0_93, %c0_94] : memref<10x64x64xf32, #tpu.memory_space<vmem>>, vector<1x64x64xf32>
    %247 = vector.shape_cast %246 : vector<1x64x64xf32> to vector<64x64xf32>
    %cst_95 = arith.constant dense<0.000000e+00> : vector<12x64xf32>
    %248 = tpu.matmul %217, %247, %cst_95 {dimension_numbers = #tpu.dot_dimension_numbers<[1], [0], [0], [1], [0, 0, 1, 1], [], []>} : vector<12x64xf32>, vector<64x64xf32>, vector<12x64xf32> -> vector<12x64xf32>
    %cst_96 = arith.constant dense<0.000000e+00> : vector<12x64xf32>
    %249 = tpu.matmul %245, %248, %cst_96 {dimension_numbers = #tpu.dot_dimension_numbers<[1], [0], [0], [1], [0, 0, 1, 1], [], []>} : vector<12x12xf32>, vector<12x64xf32>, vector<12x64xf32> -> vector<12x64xf32>
    %c6_97 = arith.constant 6 : index
    %c0_98 = arith.constant 0 : index
    %250 = vector.load %arg4[%c6_97, %c0_98] : memref<16x64xf32, #tpu.memory_space<vmem>>, vector<1x64xf32>
    %251 = vector.broadcast %250 : vector<1x64xf32> to vector<12x64xf32>
    %252 = arith.addf %249, %251 : vector<12x64xf32>
    %cst_99 = arith.constant 0.000000e+00 : f32
    %253 = vector.broadcast %cst_99 : f32 to vector<12x64xf32>
    %254 = arith.maximumf %252, %253 : vector<12x64xf32>
    %c9 = arith.constant 9 : index
    %c0_100 = arith.constant 0 : index
    %255 = vector.load %arg4[%c9, %c0_100] : memref<16x64xf32, #tpu.memory_space<vmem>>, vector<1x64xf32>
    %256 = vector.broadcast %255 : vector<1x64xf32> to vector<12x64xf32>
    %257 = arith.mulf %254, %256 : vector<12x64xf32>
    %cst_101 = arith.constant dense<0.000000e+00> : vector<12xf32>
    %258 = vector.multi_reduction <add>, %257, %cst_101 [1] : vector<12x64xf32> to vector<12xf32>
    %259 = vector.shape_cast %258 : vector<12xf32> to vector<12x1xf32>
    %260 = math.tanh %259 : vector<12x1xf32>
    %261 = vector.broadcast %260 : vector<12x1xf32> to vector<12x12xf32>
    %262 = arith.mulf %8, %261 : vector<12x12xf32>
    %cst_102 = arith.constant dense<0.000000e+00> : vector<12xf32>
    %263 = vector.multi_reduction <add>, %262, %cst_102 [0] : vector<12x12xf32> to vector<12xf32>
    %264 = vector.shape_cast %263 : vector<12xf32> to vector<1x12xf32>
    %265 = vector.broadcast %221 : vector<1x12xf32> to vector<12x12xf32>
    %266 = arith.mulf %19, %265 : vector<12x12xf32>
    %cst_103 = arith.constant dense<0.000000e+00> : vector<12xf32>
    %267 = vector.multi_reduction <add>, %266, %cst_103 [1] : vector<12x12xf32> to vector<12xf32>
    %268 = vector.shape_cast %267 : vector<12xf32> to vector<12x1xf32>
    %cst_104 = arith.constant 6.000000e-01 : f32
    %269 = vector.broadcast %cst_104 : f32 to vector<12x1xf32>
    %270 = arith.mulf %269, %268 : vector<12x1xf32>
    %271 = math.ceil %270 : vector<12x1xf32>
    %272 = vector.broadcast %264 : vector<1x12xf32> to vector<12x12xf32>
    %273 = vector.broadcast %260 : vector<12x1xf32> to vector<12x12xf32>
    %274 = arith.cmpf ogt, %272, %273 : vector<12x12xf32>
    %275 = vector.broadcast %264 : vector<1x12xf32> to vector<12x12xf32>
    %276 = vector.broadcast %260 : vector<12x1xf32> to vector<12x12xf32>
    %277 = arith.cmpf oeq, %275, %276 : vector<12x12xf32>
    %278 = arith.andi %277, %9 : vector<12x12xi1>
    %279 = arith.ori %274, %278 : vector<12x12xi1>
    %cst_105 = arith.constant 1.000000e+00 : f32
    %cst_106 = arith.constant 0.000000e+00 : f32
    %280 = vector.broadcast %cst_105 : f32 to vector<12x12xf32>
    %281 = vector.broadcast %cst_106 : f32 to vector<12x12xf32>
    %282 = arith.select %279, %280, %281 : vector<12x12xi1>, vector<12x12xf32>
    %283 = vector.broadcast %221 : vector<1x12xf32> to vector<12x12xf32>
    %284 = arith.mulf %19, %283 : vector<12x12xf32>
    %285 = vector.broadcast %214 : vector<12x1xf32> to vector<12x12xf32>
    %286 = arith.mulf %284, %285 : vector<12x12xf32>
    %287 = arith.mulf %286, %282 : vector<12x12xf32>
    %cst_107 = arith.constant dense<0.000000e+00> : vector<12xf32>
    %288 = vector.multi_reduction <add>, %287, %cst_107 [1] : vector<12x12xf32> to vector<12xf32>
    %289 = vector.shape_cast %288 : vector<12xf32> to vector<12x1xf32>
    %cst_108 = arith.constant 0.000000e+00 : f32
    %290 = vector.broadcast %cst_108 : f32 to vector<12x1xf32>
    %291 = arith.cmpf ogt, %214, %290 : vector<12x1xf32>
    %292 = arith.cmpf olt, %289, %271 : vector<12x1xf32>
    %293 = arith.andi %291, %292 : vector<12x1xi1>
    %cst_109 = arith.constant 1.000000e+00 : f32
    %cst_110 = arith.constant 0.000000e+00 : f32
    %294 = vector.broadcast %cst_109 : f32 to vector<12x1xf32>
    %295 = vector.broadcast %cst_110 : f32 to vector<12x1xf32>
    %296 = arith.select %293, %294, %295 : vector<12x1xi1>, vector<12x1xf32>
    %297 = arith.mulf %260, %296 : vector<12x1xf32>
    %298 = vector.broadcast %297 : vector<12x1xf32> to vector<12x64xf32>
    %299 = arith.mulf %254, %298 : vector<12x64xf32>
    %cst_111 = arith.constant 0.000000e+00 : f32
    %300 = vector.broadcast %cst_111 : f32 to vector<12x1xf32>
    %301 = arith.cmpf oeq, %2, %300 : vector<12x1xf32>
    %cst_112 = arith.constant 0.000000e+00 : f32
    %302 = vector.broadcast %cst_112 : f32 to vector<12x1xf32>
    %303 = arith.cmpf ogt, %296, %302 : vector<12x1xf32>
    %304 = arith.andi %301, %303 : vector<12x1xi1>
    %cst_113 = arith.constant -3.000000e+38 : f32
    %305 = vector.shape_cast %304 : vector<12x1xi1> to vector<12x1xi1>
    %306 = vector.broadcast %305 : vector<12x1xi1> to vector<12x64xi1>
    %307 = vector.broadcast %cst_113 : f32 to vector<12x64xf32>
    %308 = arith.select %306, %299, %307 : vector<12x64xi1>, vector<12x64xf32>
    %cst_114 = arith.constant dense<0xFF800000> : vector<64xf32>
    %309 = vector.multi_reduction <maximumf>, %308, %cst_114 [0] : vector<12x64xf32> to vector<64xf32>
    %310 = vector.shape_cast %309 : vector<64xf32> to vector<1x64xf32>
    %cst_115 = arith.constant 1.000000e+00 : f32
    %311 = vector.broadcast %cst_115 : f32 to vector<12x1xf32>
    %312 = arith.cmpf oeq, %2, %311 : vector<12x1xf32>
    %cst_116 = arith.constant 0.000000e+00 : f32
    %313 = vector.broadcast %cst_116 : f32 to vector<12x1xf32>
    %314 = arith.cmpf ogt, %296, %313 : vector<12x1xf32>
    %315 = arith.andi %312, %314 : vector<12x1xi1>
    %cst_117 = arith.constant -3.000000e+38 : f32
    %316 = vector.shape_cast %315 : vector<12x1xi1> to vector<12x1xi1>
    %317 = vector.broadcast %316 : vector<12x1xi1> to vector<12x64xi1>
    %318 = vector.broadcast %cst_117 : f32 to vector<12x64xf32>
    %319 = arith.select %317, %299, %318 : vector<12x64xi1>, vector<12x64xf32>
    %cst_118 = arith.constant dense<0xFF800000> : vector<64xf32>
    %320 = vector.multi_reduction <maximumf>, %319, %cst_118 [0] : vector<12x64xf32> to vector<64xf32>
    %321 = vector.shape_cast %320 : vector<64xf32> to vector<1x64xf32>
    %322 = tpu.concatenate %310, %321 in 0 : vector<1x64xf32>, vector<1x64xf32> -> vector<2x64xf32>
    %c7_119 = arith.constant 7 : index
    %c0_120 = arith.constant 0 : index
    %c0_121 = arith.constant 0 : index
    %323 = vector.load %arg3[%c7_119, %c0_120, %c0_121] : memref<10x64x64xf32, #tpu.memory_space<vmem>>, vector<1x64x64xf32>
    %324 = vector.shape_cast %323 : vector<1x64x64xf32> to vector<64x64xf32>
    %cst_122 = arith.constant dense<0.000000e+00> : vector<2x64xf32>
    %325 = tpu.matmul %322, %324, %cst_122 {dimension_numbers = #tpu.dot_dimension_numbers<[1], [0], [0], [1], [0, 0, 1, 1], [], []>} : vector<2x64xf32>, vector<64x64xf32>, vector<2x64xf32> -> vector<2x64xf32>
    %c10 = arith.constant 10 : index
    %c0_123 = arith.constant 0 : index
    %326 = vector.load %arg4[%c10, %c0_123] : memref<16x64xf32, #tpu.memory_space<vmem>>, vector<1x64xf32>
    %327 = vector.broadcast %326 : vector<1x64xf32> to vector<2x64xf32>
    %328 = arith.addf %325, %327 : vector<2x64xf32>
    %cst_124 = arith.constant 0.000000e+00 : f32
    %329 = vector.broadcast %cst_124 : f32 to vector<2x64xf32>
    %330 = arith.maximumf %328, %329 : vector<2x64xf32>
    %c8_125 = arith.constant 8 : index
    %c0_126 = arith.constant 0 : index
    %c0_127 = arith.constant 0 : index
    %331 = vector.load %arg3[%c8_125, %c0_126, %c0_127] : memref<10x64x64xf32, #tpu.memory_space<vmem>>, vector<1x64x64xf32>
    %332 = vector.shape_cast %331 : vector<1x64x64xf32> to vector<64x64xf32>
    %cst_128 = arith.constant dense<0.000000e+00> : vector<2x64xf32>
    %333 = tpu.matmul %330, %332, %cst_128 {dimension_numbers = #tpu.dot_dimension_numbers<[1], [0], [0], [1], [0, 0, 1, 1], [], []>} : vector<2x64xf32>, vector<64x64xf32>, vector<2x64xf32> -> vector<2x64xf32>
    %c11 = arith.constant 11 : index
    %c0_129 = arith.constant 0 : index
    %334 = vector.load %arg4[%c11, %c0_129] : memref<16x64xf32, #tpu.memory_space<vmem>>, vector<1x64xf32>
    %335 = vector.broadcast %334 : vector<1x64xf32> to vector<2x64xf32>
    %336 = arith.addf %333, %335 : vector<2x64xf32>
    %cst_130 = arith.constant 0.000000e+00 : f32
    %337 = vector.broadcast %cst_130 : f32 to vector<2x64xf32>
    %338 = arith.maximumf %336, %337 : vector<2x64xf32>
    %c9_131 = arith.constant 9 : index
    %c0_132 = arith.constant 0 : index
    %c0_133 = arith.constant 0 : index
    %339 = vector.load %arg3[%c9_131, %c0_132, %c0_133] : memref<10x64x64xf32, #tpu.memory_space<vmem>>, vector<1x64x64xf32>
    %340 = vector.shape_cast %339 : vector<1x64x64xf32> to vector<64x64xf32>
    %cst_134 = arith.constant dense<0.000000e+00> : vector<2x64xf32>
    %341 = tpu.matmul %338, %340, %cst_134 {dimension_numbers = #tpu.dot_dimension_numbers<[1], [0], [0], [1], [0, 0, 1, 1], [], []>} : vector<2x64xf32>, vector<64x64xf32>, vector<2x64xf32> -> vector<2x64xf32>
    %c12 = arith.constant 12 : index
    %c0_135 = arith.constant 0 : index
    %342 = vector.load %arg4[%c12, %c0_135] : memref<16x64xf32, #tpu.memory_space<vmem>>, vector<1x64xf32>
    %343 = vector.broadcast %342 : vector<1x64xf32> to vector<2x64xf32>
    %344 = arith.addf %341, %343 : vector<2x64xf32>
    %345 = vector.extract_strided_slice %344 {offsets = [0, 0], sizes = [2, 2], strides = [1, 1]} : vector<2x64xf32> to vector<2x2xf32>
    %cst_136 = arith.constant dense<0xFF800000> : vector<2xf32>
    %346 = vector.multi_reduction <maximumf>, %345, %cst_136 [1] : vector<2x2xf32> to vector<2xf32>
    %347 = vector.shape_cast %346 : vector<2xf32> to vector<2x1xf32>
    %348 = vector.broadcast %347 : vector<2x1xf32> to vector<2x2xf32>
    %349 = arith.subf %345, %348 : vector<2x2xf32>
    %350 = math.exp %349 : vector<2x2xf32>
    %cst_137 = arith.constant dense<0.000000e+00> : vector<2xf32>
    %351 = vector.multi_reduction <add>, %350, %cst_137 [1] : vector<2x2xf32> to vector<2xf32>
    %352 = vector.shape_cast %351 : vector<2xf32> to vector<2x1xf32>
    %353 = math.log %352 : vector<2x1xf32>
    %354 = vector.broadcast %353 : vector<2x1xf32> to vector<2x2xf32>
    %355 = arith.subf %349, %354 : vector<2x2xf32>
    %c0_138 = arith.constant 0 : index
    %c0_139 = arith.constant 0 : index
    %356 = vector.load %arg5[%c0_138, %c0_139] : memref<2x2xf32, #tpu.memory_space<vmem>>, vector<2x2xf32>
    tpu.vector_store %arg5[%c0_138, %c0_139], %355 {strides = array<i32>} : memref<2x2xf32, #tpu.memory_space<vmem>>, vector<2x2xf32>,
    return
  }
}

</mosaic_0001>

<llo_original>
// kernel: model_forward.1
$region0: #{model_forward.1}
  #allocation0 [shape = 'u32[]', space=smem, size = 0x4, offset = 0x4, fixed_abs, tag = 'smem constant byte address 0x4 - core index']
  #allocation1 [shape = 'u32[72,128]{1,0:T(1,128)}', space=vmem, size = 0x9000, scoped, tag = 'internal scratch']
  %s0 = inlined_call_operand.vmem [shape: f32[12,64], index: 0, kind: input, shape index: {}]
  %s1 = inlined_call_operand.vmem [shape: f32[12,12], index: 1, kind: input, shape index: {}]
  %s2 = inlined_call_operand.vmem [shape: f32[12,1], index: 2, kind: input, shape index: {}]
  %s3 = inlined_call_operand.hbm [shape: f32[10,64,64], index: 3, kind: input, shape index: {}]
  %s4 = inlined_call_operand.vmem [shape: f32[16,64], index: 4, kind: input, shape index: {}]
  %s5 = inlined_call_operand.hbm [shape: f32[2,2], index: 5, kind: output, shape index: {}]
  %s6 = sld [smem:[#allocation0]]
  $region34: #{model_forward.1} parent=0
    _
  %s8 = ssub.s32 1, %s6
  %s9 = scalar_select 0, %s8, %s6
  $region1: #{model_forward.1} parent=0
    #allocation2 [shape = 'u8[327680]{0}', space=vmem, size = 0x50000, scoped, tag = 'input window, operand 3, single buffered']
    #allocation3 [shape = 's32[1]{0}', space=sflag, size = 0x4, scoped, tag = 'scoped memory for model_forward.1']
    #allocation4 [shape = 's32[1]{0}', space=sflag, size = 0x4, scoped, tag = 'scoped memory for model_forward.1']
    #allocation5 [shape = 'u8[1024]{0}', space=vmem, size = 0x400, scoped, tag = 'output window, operand 0, single buffered']
    %10 = vsyncpa [#allocation3], 0
    %11 = vsyncpa [#allocation4], 0
    // Predicated region
    $region2: #{model_forward.1} parent=1 // pred_check
      _
    $region3: #{model_forward.1} parent=1 // pred_check_branch
      %13 = sbr.rel (0) target = $region5
    $region4: #{model_forward.1} parent=1 // pred_region
      _
    $region5: #{model_forward.1} parent=1 // pred_fallthru
      _
    // Predicated region
    $region6: #{model_forward.1} parent=1 // pred_check
      _
    $region7: #{model_forward.1} parent=1 // pred_check_branch
      %15 = sbr.rel (0) target = $region9
    $region8: #{model_forward.1} parent=1 // pred_region
      _
    $region9: #{model_forward.1} parent=1 // pred_fallthru
      _
    // Predicated region
    $region10: #{model_forward.1} parent=1 // pred_check
      _
    $region11: #{model_forward.1} parent=1 // pred_check_branch
      %17 = sbr.rel (0) target = $region13
    $region12: #{model_forward.1} parent=1 // pred_region
      _
    $region13: #{model_forward.1} parent=1 // pred_fallthru
      _
    // Predicated region
    $region14: #{model_forward.1} parent=1 // pred_check
      _
    $region15: #{model_forward.1} parent=1 // pred_check_branch
      %19 = sbr.rel (0) target = $region17
    $region16: #{model_forward.1} parent=1 // pred_region
      %21 = vsyncadd [#allocation3], 0
      %s22 = sshll.u32 %s3, 4
      %s23 = int_to_ptr.hbm [resolvable:$true] %s22
      %s24 = sshll.u32 [#allocation2], 4
      %s25 = int_to_ptr.vmem [resolvable:$true] %s24
      %30 = dma.hbm_to_vmem [thread:$0]  %s23, 10240, %s25, [#allocation3], 128, 128, 8
    $region17: #{model_forward.1} parent=1 // pred_fallthru
      _
    // Predicated region
    $region18: #{model_forward.1} parent=1 // pred_check
      _
    $region19: #{model_forward.1} parent=1 // pred_check_branch
      %32 = sbr.rel (0) target = $region21
    $region20: #{model_forward.1} parent=1 // pred_region
      _
    $region21: #{model_forward.1} parent=1 // pred_fallthru
      _
    // Predicated region
    $region22: #{model_forward.1} parent=1 // pred_check
      _
    $region23: #{model_forward.1} parent=1 // pred_check_branch
      %34 = sbr.rel (0) target = $region25
    $region24: #{model_forward.1} parent=1 // pred_region
      %36 = dma.done [#allocation3], 10240
    $region25: #{model_forward.1} parent=1 // pred_fallthru
      _
    %v37 = vld [vmem:[%s0] sm:$0xff]
    %v38 = vld [vmem:[%s0 + $0x8] sm:$0xf]
    %v39 = vld [vmem:[%s1] sm:$0xff]
    %v40 = vld [vmem:[%s1 + $0x8] sm:$0xf]
    %v41 = vld [vmem:[%s2] sm:$0xff]
    %v42 = vld [vmem:[%s2 + $0x8] sm:$0xf]
    %v43 = vlaneseq
    %v44 = vshrl.u32 %v43, 7
    %v45 = vadd.s32 %v44, 8
    %v46 = vlaneseq
    %v47 = vand.u32 %v46, 127
    %vm48 = vcmp.eq.s32.totalorder %v44, %v47
    %vm49 = vcmp.eq.s32.totalorder %v45, %v47
    %v50 = vsel %vm48, 1.0, 0.0
    %v51 = vsel %vm49, 1.0, 0.0
    %vm52 = vcmp.lt.s32.totalorder %v47, %v44
    %vm53 = vcmp.lt.s32.totalorder %v47, %v45
    %55 = vset.pattern.permute.xlu0 0
    %56 = vperm.xlu0 %55, %v41
    %v57 = vpop.permute.xlu0 %56
    %60 = vset.pattern.permute.xlu0 0
    %61 = vperm.xlu0 %60, %v42
    %v62 = vpop.permute.xlu0 %61
    %v64 = vmul.f32 %v50, %v57
    %v65 = vmul.f32 %v51, %v62
    %vm66 = vcmask 97280
    %v67 = vsel %vm66, %v64, 0.0
    %vm68 = vcmask 93184
    %v69 = vsel %vm68, %v65, 0.0
    %v70 = vadd.f32 %v67, %v69
    %v71 = vrot.slane %v70, 4
    %v72 = vadd.f32 %v70, %v71
    %v73 = vrot.slane %v72, 2
    %v74 = vadd.f32 %v72, %v73
    %v75 = vrot.slane %v74, 1
    %v76 = vadd.f32 %v74, %v75
    %vm77 = vcmp.eq.f32.partialorder %v57, %v76
    %vm78 = vcmp.eq.f32.partialorder %v62, %v76
    %v79 = vsel %vm77, 1.0, 0.0
    %v80 = vsel %vm78, 1.0, 0.0
    %v81 = vadd.f32 %v39, %v50
    %v82 = vadd.f32 %v40, %v51
    %v83 = vsel %vm66, %v81, 0.0
    %84 = vadd.xlane.f32.xlu0 %v83
    %v85 = vpop.xlane.xlu0 %84
    %v86 = vsel %vm68, %v82, 0.0
    %87 = vadd.xlane.f32.xlu0 %v86
    %v88 = vpop.xlane.xlu0 %87
    %vm89 = vcmp.gt.f32.partialorder %v85, 0.0
    %vm90 = vcmp.gt.f32.partialorder %v88, 0.0
    %v91 = vmax.f32 %v85, 1.0
    %v92 = vmax.f32 %v88, 1.0
    %v93 = vrsqrt.pop %v91
    %v94 = vmul.f32 %v93, %v91
    %v95 = vmul.f32 %v94, %v93
    %v96 = vmul.f32 0.5, %v95
    %v97 = vsub.f32 1.5, %v96
    %v98 = vmul.f32 %v93, %v97
    %vm99 = vweird.f32 %v91
    %vm100 = vweird.f32 %v93
    %vm101 = vmor %vm99, %vm100
    %v102 = vsel %vm101, %v93, %v98
    %v103 = vrsqrt.pop %v92
    %v104 = vmul.f32 %v103, %v92
    %v105 = vmul.f32 %v104, %v103
    %v106 = vmul.f32 0.5, %v105
    %v107 = vsub.f32 1.5, %v106
    %v108 = vmul.f32 %v103, %v107
    %vm109 = vweird.f32 %v92
    %vm110 = vweird.f32 %v103
    %vm111 = vmor %vm109, %vm110
    %v112 = vsel %vm111, %v103, %v108
    %v113 = vsel %vm89, %v102, 0.0
    %v114 = vsel %vm90, %v112, 0.0
    %v115 = vmul.f32 %v113, %v81
    %v116 = vmul.f32 %v114, %v82
    %v117 = vmul.f32 %v50, %v113
    %v118 = vmul.f32 %v51, %v114
    %v119 = vsel %vm66, %v117, 0.0
    %v120 = vsel %vm68, %v118, 0.0
    %v121 = vadd.f32 %v119, %v120
    %v122 = vrot.slane %v121, 4
    %v123 = vadd.f32 %v121, %v122
    %v124 = vrot.slane %v123, 2
    %v125 = vadd.f32 %v123, %v124
    %v126 = vrot.slane %v125, 1
    %v127 = vadd.f32 %v125, %v126
    %v128 = vmul.f32 %v115, %v127
    %v129 = vmul.f32 %v116, %v127
    %v130 = vld [vmem:[#allocation2] sm:$0xff]
    %v131 = vld [vmem:[#allocation2 + $0x8] sm:$0xff]
    %v132 = vld [vmem:[#allocation2 + $0x10] sm:$0xff]
    %v133 = vld [vmem:[#allocation2 + $0x18] sm:$0xff]
    %v134 = vld [vmem:[#allocation2 + $0x20] sm:$0xff]
    %v135 = vld [vmem:[#allocation2 + $0x28] sm:$0xff]
    %v136 = vld [vmem:[#allocation2 + $0x30] sm:$0xff]
    %v137 = vld [vmem:[#allocation2 + $0x38] sm:$0xff]
    %vm138 = vcmask 523264
    %v140 = vsel %vm138, %v37, 0
    %v143 = vsel %vm138, %v38, 0
    %145 = vmatpush.msra.mxu0 0.0
    %146 = vmatpush.msra.mxu0 0.0
    %147 = vmatpush.msra.mxu0 0.0
    %148 = vmatpush.msra.mxu0 0.0
    %149 = vmatpush.msra.mxu0 0.0
    %150 = vmatpush.msra.mxu0 0.0
    %151 = vmatpush.msra.mxu0 0.0
    %152 = vmatpush.msra.mxu0 0.0
    %153 = vmatpush.msra.mxu0 %v137
    %154 = vmatpush.msra.mxu0 %v136
    %155 = vmatpush.msra.mxu0 %v135
    %156 = vmatpush.msra.mxu0 %v134
    %157 = vmatpush.msra.mxu0 %v133
    %158 = vmatpush.msra.mxu0 %v132
    %159 = vmatpush.msra.mxu0 %v131
    %160 = vmatpush.msra.mxu0 %v130
    %161 = vmatmul.f32.gmra.mxu0 %v140
    %v162 = vpop.f32.mrf.mxu0
    %v163 = vadd.f32 0.0, %v162
    %164 = vmatmul.f32.gmra.mxu0 %v143
    %v165 = vpop.f32.mrf.mxu0
    %v166 = vadd.f32 0.0, %v165
    %167 = vdwg.mxu0
    %v168 = vld [vmem:[%s4] sm:$0x1]
    %v169 = vperm.slane %v168, 0
    %v171 = vsel %vm66, %v128, 0
    %v174 = vsel %vm66, %v129, 0
    %vm176 = vcmask 1043456
    %v178 = vsel %vm176, %v166, 0
    %180 = vmatpush.msra.mxu0 0.0
    %181 = vmatpush.msra.mxu0 0.0
    %182 = vmatpush.msra.mxu0 0.0
    %183 = vmatpush.msra.mxu0 0.0
    %184 = vmatpush.msra.mxu0 0.0
    %185 = vmatpush.msra.mxu0 0.0
    %186 = vmatpush.msra.mxu0 0.0
    %187 = vmatpush.msra.mxu0 0.0
    %188 = vmatpush.msra.mxu0 0.0
    %189 = vmatpush.msra.mxu0 0.0
    %190 = vmatpush.msra.mxu0 0.0
    %191 = vmatpush.msra.mxu0 0.0
    %192 = vmatpush.msra.mxu0 0.0
    %193 = vmatpush.msra.mxu0 0.0
    %194 = vmatpush.msra.mxu0 %v178
    %195 = vmatpush.msra.mxu0 %v163
    %196 = vmatmul.f32.gmra.mxu0 %v171
    %v197 = vpop.f32.mrf.mxu0
    %v198 = vadd.f32 %v169, %v197
    %199 = vmatmul.f32.gmra.mxu0 %v174
    %v200 = vpop.f32.mrf.mxu0
    %v201 = vadd.f32 %v169, %v200
    %202 = vdwg.mxu0
    %v203 = vmax.f32 %v198, 0.0
    %v204 = vmax.f32 %v201, 0.0
    %s205 = scalar_lea.vmem [#allocation2], 64
    %v206 = vld [vmem:[%s205] sm:$0xff]
    %v207 = vld [vmem:[%s205 + $0x8] sm:$0xff]
    %v208 = vld [vmem:[%s205 + $0x10] sm:$0xff]
    %v209 = vld [vmem:[%s205 + $0x18] sm:$0xff]
    %v210 = vld [vmem:[%s205 + $0x20] sm:$0xff]
    %v211 = vld [vmem:[%s205 + $0x28] sm:$0xff]
    %v212 = vld [vmem:[%s205 + $0x30] sm:$0xff]
    %v213 = vld [vmem:[%s205 + $0x38] sm:$0xff]
    %v215 = vsel %vm138, %v203, 0
    %v218 = vsel %vm138, %v204, 0
    %220 = vmatpush.msra.mxu0 0.0
    %221 = vmatpush.msra.mxu0 0.0
    %222 = vmatpush.msra.mxu0 0.0
    %223 = vmatpush.msra.mxu0 0.0
    %224 = vmatpush.msra.mxu0 0.0
    %225 = vmatpush.msra.mxu0 0.0
    %226 = vmatpush.msra.mxu0 0.0
    %227 = vmatpush.msra.mxu0 0.0
    %228 = vmatpush.msra.mxu0 %v213
    %229 = vmatpush.msra.mxu0 %v212
    %230 = vmatpush.msra.mxu0 %v211
    %231 = vmatpush.msra.mxu0 %v210
    %232 = vmatpush.msra.mxu0 %v209
    %233 = vmatpush.msra.mxu0 %v208
    %234 = vmatpush.msra.mxu0 %v207
    %235 = vmatpush.msra.mxu0 %v206
    %236 = vmatmul.f32.gmra.mxu0 %v215
    %v237 = vpop.f32.mrf.mxu0
    %v238 = vadd.f32 0.0, %v237
    %239 = vmatmul.f32.gmra.mxu0 %v218
    %v240 = vpop.f32.mrf.mxu0
    %v241 = vadd.f32 0.0, %v240
    %242 = vdwg.mxu0
    %v243 = vld [vmem:[%s4 + $0x1] sm:$0x1]
    %v244 = vperm.slane %v243, 0
    %v246 = vsel %vm176, %v241, 0
    %248 = vmatpush.msra.mxu0 0.0
    %249 = vmatpush.msra.mxu0 0.0
    %250 = vmatpush.msra.mxu0 0.0
    %251 = vmatpush.msra.mxu0 0.0
    %252 = vmatpush.msra.mxu0 0.0
    %253 = vmatpush.msra.mxu0 0.0
    %254 = vmatpush.msra.mxu0 0.0
    %255 = vmatpush.msra.mxu0 0.0
    %256 = vmatpush.msra.mxu0 0.0
    %257 = vmatpush.msra.mxu0 0.0
    %258 = vmatpush.msra.mxu0 0.0
    %259 = vmatpush.msra.mxu0 0.0
    %260 = vmatpush.msra.mxu0 0.0
    %261 = vmatpush.msra.mxu0 0.0
    %262 = vmatpush.msra.mxu0 %v246
    %263 = vmatpush.msra.mxu0 %v238
    %264 = vmatmul.f32.gmra.mxu0 %v171
    %v265 = vpop.f32.mrf.mxu0
    %v266 = vadd.f32 %v244, %v265
    %267 = vmatmul.f32.gmra.mxu0 %v174
    %v268 = vpop.f32.mrf.mxu0
    %v269 = vadd.f32 %v244, %v268
    %270 = vdwg.mxu0
    %v271 = vmax.f32 %v266, 0.0
    %v272 = vmax.f32 %v269, 0.0
    %s273 = scalar_lea.vmem [#allocation2], 128
    %v274 = vld [vmem:[%s273] sm:$0xff]
    %v275 = vld [vmem:[%s273 + $0x8] sm:$0xff]
    %v276 = vld [vmem:[%s273 + $0x10] sm:$0xff]
    %v277 = vld [vmem:[%s273 + $0x18] sm:$0xff]
    %v278 = vld [vmem:[%s273 + $0x20] sm:$0xff]
    %v279 = vld [vmem:[%s273 + $0x28] sm:$0xff]
    %v280 = vld [vmem:[%s273 + $0x30] sm:$0xff]
    %v281 = vld [vmem:[%s273 + $0x38] sm:$0xff]
    %v283 = vsel %vm138, %v271, 0
    %v286 = vsel %vm138, %v272, 0
    %288 = vmatpush.msra.mxu0 0.0
    %289 = vmatpush.msra.mxu0 0.0
    %290 = vmatpush.msra.mxu0 0.0
    %291 = vmatpush.msra.mxu0 0.0
    %292 = vmatpush.msra.mxu0 0.0
    %293 = vmatpush.msra.mxu0 0.0
    %294 = vmatpush.msra.mxu0 0.0
    %295 = vmatpush.msra.mxu0 0.0
    %296 = vmatpush.msra.mxu0 %v281
    %297 = vmatpush.msra.mxu0 %v280
    %298 = vmatpush.msra.mxu0 %v279
    %299 = vmatpush.msra.mxu0 %v278
    %300 = vmatpush.msra.mxu0 %v277
    %301 = vmatpush.msra.mxu0 %v276
    %302 = vmatpush.msra.mxu0 %v275
    %303 = vmatpush.msra.mxu0 %v274
    %304 = vmatmul.f32.gmra.mxu0 %v283
    %v305 = vpop.f32.mrf.mxu0
    %v306 = vadd.f32 0.0, %v305
    %307 = vmatmul.f32.gmra.mxu0 %v286
    %v308 = vpop.f32.mrf.mxu0
    %v309 = vadd.f32 0.0, %v308
    %310 = vdwg.mxu0
    %v311 = vld [vmem:[%s4 + $0x2] sm:$0x1]
    %v312 = vperm.slane %v311, 0
    %v314 = vsel %vm176, %v309, 0
    %316 = vmatpush.msra.mxu0 0.0
    %317 = vmatpush.msra.mxu0 0.0
    %318 = vmatpush.msra.mxu0 0.0
    %319 = vmatpush.msra.mxu0 0.0
    %320 = vmatpush.msra.mxu0 0.0
    %321 = vmatpush.msra.mxu0 0.0
    %322 = vmatpush.msra.mxu0 0.0
    %323 = vmatpush.msra.mxu0 0.0
    %324 = vmatpush.msra.mxu0 0.0
    %325 = vmatpush.msra.mxu0 0.0
    %326 = vmatpush.msra.mxu0 0.0
    %327 = vmatpush.msra.mxu0 0.0
    %328 = vmatpush.msra.mxu0 0.0
    %329 = vmatpush.msra.mxu0 0.0
    %330 = vmatpush.msra.mxu0 %v314
    %331 = vmatpush.msra.mxu0 %v306
    %332 = vmatmul.f32.gmra.mxu0 %v171
    %v333 = vpop.f32.mrf.mxu0
    %v334 = vadd.f32 %v312, %v333
    %335 = vmatmul.f32.gmra.mxu0 %v174
    %v336 = vpop.f32.mrf.mxu0
    %v337 = vadd.f32 %v312, %v336
    %338 = vdwg.mxu0
    %v339 = vmax.f32 %v334, 0.0
    %v340 = vmax.f32 %v337, 0.0
    %s341 = scalar_lea.vmem [#allocation2], 192
    %v342 = vld [vmem:[%s341] sm:$0xff]
    %v343 = vld [vmem:[%s341 + $0x8] sm:$0xff]
    %v344 = vld [vmem:[%s341 + $0x10] sm:$0xff]
    %v345 = vld [vmem:[%s341 + $0x18] sm:$0xff]
    %v346 = vld [vmem:[%s341 + $0x20] sm:$0xff]
    %v347 = vld [vmem:[%s341 + $0x28] sm:$0xff]
    %v348 = vld [vmem:[%s341 + $0x30] sm:$0xff]
    %v349 = vld [vmem:[%s341 + $0x38] sm:$0xff]
    %v351 = vsel %vm138, %v339, 0
    %v354 = vsel %vm138, %v340, 0
    %356 = vmatpush.msra.mxu0 0.0
    %357 = vmatpush.msra.mxu0 0.0
    %358 = vmatpush.msra.mxu0 0.0
    %359 = vmatpush.msra.mxu0 0.0
    %360 = vmatpush.msra.mxu0 0.0
    %361 = vmatpush.msra.mxu0 0.0
    %362 = vmatpush.msra.mxu0 0.0
    %363 = vmatpush.msra.mxu0 0.0
    %364 = vmatpush.msra.mxu0 %v349
    %365 = vmatpush.msra.mxu0 %v348
    %366 = vmatpush.msra.mxu0 %v347
    %367 = vmatpush.msra.mxu0 %v346
    %368 = vmatpush.msra.mxu0 %v345
    %369 = vmatpush.msra.mxu0 %v344
    %370 = vmatpush.msra.mxu0 %v343
    %371 = vmatpush.msra.mxu0 %v342
    %372 = vmatmul.f32.gmra.mxu0 %v351
    %v373 = vpop.f32.mrf.mxu0
    %v374 = vadd.f32 0.0, %v373
    %375 = vmatmul.f32.gmra.mxu0 %v354
    %v376 = vpop.f32.mrf.mxu0
    %v377 = vadd.f32 0.0, %v376
    %378 = vdwg.mxu0
    %v379 = vld [vmem:[%s4 + $0x3] sm:$0x1]
    %v380 = vperm.slane %v379, 0
    %v382 = vsel %vm176, %v377, 0
    %384 = vmatpush.msra.mxu0 0.0
    %385 = vmatpush.msra.mxu0 0.0
    %386 = vmatpush.msra.mxu0 0.0
    %387 = vmatpush.msra.mxu0 0.0
    %388 = vmatpush.msra.mxu0 0.0
    %389 = vmatpush.msra.mxu0 0.0
    %390 = vmatpush.msra.mxu0 0.0
    %391 = vmatpush.msra.mxu0 0.0
    %392 = vmatpush.msra.mxu0 0.0
    %393 = vmatpush.msra.mxu0 0.0
    %394 = vmatpush.msra.mxu0 0.0
    %395 = vmatpush.msra.mxu0 0.0
    %396 = vmatpush.msra.mxu0 0.0
    %397 = vmatpush.msra.mxu0 0.0
    %398 = vmatpush.msra.mxu0 %v382
    %399 = vmatpush.msra.mxu0 %v374
    %400 = vmatmul.f32.gmra.mxu0 %v171
    %v401 = vpop.f32.mrf.mxu0
    %v402 = vadd.f32 %v380, %v401
    %403 = vmatmul.f32.gmra.mxu0 %v174
    %v404 = vpop.f32.mrf.mxu0
    %v405 = vadd.f32 %v380, %v404
    %406 = vdwg.mxu0
    %v407 = vmax.f32 %v402, 0.0
    %v408 = vmax.f32 %v405, 0.0
    %s409 = scalar_lea.vmem [#allocation2], 256
    %v410 = vld [vmem:[%s409] sm:$0xff]
    %v411 = vld [vmem:[%s409 + $0x8] sm:$0xff]
    %v412 = vld [vmem:[%s409 + $0x10] sm:$0xff]
    %v413 = vld [vmem:[%s409 + $0x18] sm:$0xff]
    %v414 = vld [vmem:[%s409 + $0x20] sm:$0xff]
    %v415 = vld [vmem:[%s409 + $0x28] sm:$0xff]
    %v416 = vld [vmem:[%s409 + $0x30] sm:$0xff]
    %v417 = vld [vmem:[%s409 + $0x38] sm:$0xff]
    %v419 = vsel %vm138, %v407, 0
    %v422 = vsel %vm138, %v408, 0
    %424 = vmatpush.msra.mxu0 0.0
    %425 = vmatpush.msra.mxu0 0.0
    %426 = vmatpush.msra.mxu0 0.0
    %427 = vmatpush.msra.mxu0 0.0
    %428 = vmatpush.msra.mxu0 0.0
    %429 = vmatpush.msra.mxu0 0.0
    %430 = vmatpush.msra.mxu0 0.0
    %431 = vmatpush.msra.mxu0 0.0
    %432 = vmatpush.msra.mxu0 %v417
    %433 = vmatpush.msra.mxu0 %v416
    %434 = vmatpush.msra.mxu0 %v415
    %435 = vmatpush.msra.mxu0 %v414
    %436 = vmatpush.msra.mxu0 %v413
    %437 = vmatpush.msra.mxu0 %v412
    %438 = vmatpush.msra.mxu0 %v411
    %439 = vmatpush.msra.mxu0 %v410
    %440 = vmatmul.f32.gmra.mxu0 %v419
    %v441 = vpop.f32.mrf.mxu0
    %v442 = vadd.f32 0.0, %v441
    %443 = vmatmul.f32.gmra.mxu0 %v422
    %v444 = vpop.f32.mrf.mxu0
    %v445 = vadd.f32 0.0, %v444
    %446 = vdwg.mxu0
    %v447 = vld [vmem:[%s4 + $0x4] sm:$0x1]
    %v448 = vperm.slane %v447, 0
    %v450 = vsel %vm176, %v445, 0
    %452 = vmatpush.msra.mxu0 0.0
    %453 = vmatpush.msra.mxu0 0.0
    %454 = vmatpush.msra.mxu0 0.0
    %455 = vmatpush.msra.mxu0 0.0
    %456 = vmatpush.msra.mxu0 0.0
    %457 = vmatpush.msra.mxu0 0.0
    %458 = vmatpush.msra.mxu0 0.0
    %459 = vmatpush.msra.mxu0 0.0
    %460 = vmatpush.msra.mxu0 0.0
    %461 = vmatpush.msra.mxu0 0.0
    %462 = vmatpush.msra.mxu0 0.0
    %463 = vmatpush.msra.mxu0 0.0
    %464 = vmatpush.msra.mxu0 0.0
    %465 = vmatpush.msra.mxu0 0.0
    %466 = vmatpush.msra.mxu0 %v450
    %467 = vmatpush.msra.mxu0 %v442
    %468 = vmatmul.f32.gmra.mxu0 %v171
    %v469 = vpop.f32.mrf.mxu0
    %v470 = vadd.f32 %v448, %v469
    %471 = vmatmul.f32.gmra.mxu0 %v174
    %v472 = vpop.f32.mrf.mxu0
    %v473 = vadd.f32 %v448, %v472
    %474 = vdwg.mxu0
    %v475 = vmax.f32 %v470, 0.0
    %v476 = vmax.f32 %v473, 0.0
    %v477 = vld [vmem:[%s4 + $0x7] sm:$0x1]
    %v478 = vperm.slane %v477, 0
    %v479 = vmul.f32 %v475, %v478
    %v480 = vmul.f32 %v476, %v478
    %v481 = vsel %vm138, %v479, 0.0
    %482 = vadd.xlane.f32.xlu0 %v481
    %v483 = vpop.xlane.xlu0 %482
    %vm484 = vcmask 519168
    %v485 = vsel %vm484, %v480, 0.0
    %486 = vadd.xlane.f32.xlu0 %v485
    %v487 = vpop.xlane.xlu0 %486
    %v488 = vtanh.pop %v483
    %v489 = vtanh.pop %v487
    %v490 = vmul.f32 %v50, %v488
    %v491 = vmul.f32 %v51, %v489
    %v492 = vsel %vm66, %v490, 0.0
    %v493 = vsel %vm68, %v491, 0.0
    %v494 = vadd.f32 %v492, %v493
    %v495 = vrot.slane %v494, 4
    %v496 = vadd.f32 %v494, %v495
    %v497 = vrot.slane %v496, 2
    %v498 = vadd.f32 %v496, %v497
    %v499 = vrot.slane %v498, 1
    %v500 = vadd.f32 %v498, %v499
    %v501 = vsel %vm66, %v79, 0.0
    %502 = vadd.xlane.f32.xlu0 %v501
    %v503 = vpop.xlane.xlu0 %502
    %v504 = vsel %vm68, %v80, 0.0
    %505 = vadd.xlane.f32.xlu0 %v504
    %v506 = vpop.xlane.xlu0 %505
    %v507 = vmul.f32 %v503, 0.6
    %v508 = vmul.f32 %v506, 0.6
    %v509 = vceil.f32 %v507
    %v510 = vceil.f32 %v508
    %vm511 = vcmp.gt.f32.partialorder %v500, %v488
    %vm512 = vcmp.gt.f32.partialorder %v500, %v489
    %vm513 = vcmp.eq.f32.partialorder %v500, %v488
    %vm514 = vcmp.eq.f32.partialorder %v500, %v489
    %vm515 = vmand %vm513, %vm52
    %vm516 = vmand %vm514, %vm53
    %vm517 = vmor %vm511, %vm515
    %vm518 = vmor %vm512, %vm516
    %v519 = vsel %vm517, 1.0, 0.0
    %v520 = vsel %vm518, 1.0, 0.0
    %v521 = vmul.f32 %v79, %v519
    %v522 = vmul.f32 %v80, %v520
    %v523 = vsel %vm66, %v521, 0.0
    %524 = vadd.xlane.f32.xlu0 %v523
    %v525 = vpop.xlane.xlu0 %524
    %v526 = vsel %vm68, %v522, 0.0
    %527 = vadd.xlane.f32.xlu0 %v526
    %v528 = vpop.xlane.xlu0 %527
    %vm529 = vcmp.gt.f32.partialorder 1.0, 0.0
    %vm530 = vcmp.lt.f32.partialorder %v525, %v509
    %vm531 = vcmp.lt.f32.partialorder %v528, %v510
    %vm532 = vmand %vm529, %vm530
    %vm533 = vmand %vm529, %vm531
    %v534 = vsel %vm532, 1.0, 0.0
    %v535 = vsel %vm533, 1.0, 0.0
    %v536 = vmul.f32 %v488, %v534
    %v537 = vmul.f32 %v489, %v535
    %v538 = vmul.f32 %v475, %v536
    %v539 = vmul.f32 %v476, %v537
    %v540 = vmul.f32 %v50, %v534
    %v541 = vmul.f32 %v51, %v535
    %v542 = vsel %vm66, %v540, 0.0
    %v543 = vsel %vm68, %v541, 0.0
    %v544 = vadd.f32 %v542, %v543
    %v545 = vrot.slane %v544, 4
    %v546 = vadd.f32 %v544, %v545
    %v547 = vrot.slane %v546, 2
    %v548 = vadd.f32 %v546, %v547
    %v549 = vrot.slane %v548, 1
    %v550 = vadd.f32 %v548, %v549
    %v551 = vmul.f32 %v534, %v550
    %v552 = vmul.f32 %v535, %v550
    %v553 = vmul.f32 %v39, %v551
    %v554 = vmul.f32 %v40, %v552
    %v555 = vadd.f32 %v553, %v540
    %v556 = vadd.f32 %v554, %v541
    %v557 = vsel %vm66, %v555, 0.0
    %558 = vadd.xlane.f32.xlu0 %v557
    %v559 = vpop.xlane.xlu0 %558
    %v560 = vsel %vm68, %v556, 0.0
    %561 = vadd.xlane.f32.xlu0 %v560
    %v562 = vpop.xlane.xlu0 %561
    %vm563 = vcmp.gt.f32.partialorder %v559, 0.0
    %vm564 = vcmp.gt.f32.partialorder %v562, 0.0
    %v565 = vmax.f32 %v559, 1.0
    %v566 = vmax.f32 %v562, 1.0
    %v567 = vrsqrt.pop %v565
    %v568 = vmul.f32 %v567, %v565
    %v569 = vmul.f32 %v568, %v567
    %v570 = vmul.f32 0.5, %v569
    %v571 = vsub.f32 1.5, %v570
    %v572 = vmul.f32 %v567, %v571
    %vm573 = vweird.f32 %v565
    %vm574 = vweird.f32 %v567
    %vm575 = vmor %vm573, %vm574
    %v576 = vsel %vm575, %v567, %v572
    %v577 = vrsqrt.pop %v566
    %v578 = vmul.f32 %v577, %v566
    %v579 = vmul.f32 %v578, %v577
    %v580 = vmul.f32 0.5, %v579
    %v581 = vsub.f32 1.5, %v580
    %v582 = vmul.f32 %v577, %v581
    %vm583 = vweird.f32 %v566
    %vm584 = vweird.f32 %v577
    %vm585 = vmor %vm583, %vm584
    %v586 = vsel %vm585, %v577, %v582
    %v587 = vsel %vm563, %v576, 0.0
    %v588 = vsel %vm564, %v586, 0.0
    %v589 = vmul.f32 %v587, %v555
    %v590 = vmul.f32 %v588, %v556
    %v591 = vmul.f32 %v50, %v587
    %v592 = vmul.f32 %v51, %v588
    %v593 = vsel %vm66, %v591, 0.0
    %v594 = vsel %vm68, %v592, 0.0
    %v595 = vadd.f32 %v593, %v594
    %v596 = vrot.slane %v595, 4
    %v597 = vadd.f32 %v595, %v596
    %v598 = vrot.slane %v597, 2
    %v599 = vadd.f32 %v597, %v598
    %v600 = vrot.slane %v599, 1
    %v601 = vadd.f32 %v599, %v600
    %v602 = vmul.f32 %v589, %v601
    %v603 = vmul.f32 %v590, %v601
    %s604 = scalar_lea.vmem [#allocation2], 320
    %v605 = vld [vmem:[%s604] sm:$0xff]
    %v606 = vld [vmem:[%s604 + $0x8] sm:$0xff]
    %v607 = vld [vmem:[%s604 + $0x10] sm:$0xff]
    %v608 = vld [vmem:[%s604 + $0x18] sm:$0xff]
    %v609 = vld [vmem:[%s604 + $0x20] sm:$0xff]
    %v610 = vld [vmem:[%s604 + $0x28] sm:$0xff]
    %v611 = vld [vmem:[%s604 + $0x30] sm:$0xff]
    %v612 = vld [vmem:[%s604 + $0x38] sm:$0xff]
    %v614 = vsel %vm138, %v538, 0
    %v617 = vsel %vm138, %v539, 0
    %619 = vmatpush.msra.mxu0 0.0
    %620 = vmatpush.msra.mxu0 0.0
    %621 = vmatpush.msra.mxu0 0.0
    %622 = vmatpush.msra.mxu0 0.0
    %623 = vmatpush.msra.mxu0 0.0
    %624 = vmatpush.msra.mxu0 0.0
    %625 = vmatpush.msra.mxu0 0.0
    %626 = vmatpush.msra.mxu0 0.0
    %627 = vmatpush.msra.mxu0 %v612
    %628 = vmatpush.msra.mxu0 %v611
    %629 = vmatpush.msra.mxu0 %v610
    %630 = vmatpush.msra.mxu0 %v609
    %631 = vmatpush.msra.mxu0 %v608
    %632 = vmatpush.msra.mxu0 %v607
    %633 = vmatpush.msra.mxu0 %v606
    %634 = vmatpush.msra.mxu0 %v605
    %635 = vmatmul.f32.gmra.mxu0 %v614
    %v636 = vpop.f32.mrf.mxu0
    %v637 = vadd.f32 0.0, %v636
    %638 = vmatmul.f32.gmra.mxu0 %v617
    %v639 = vpop.f32.mrf.mxu0
    %v640 = vadd.f32 0.0, %v639
    %641 = vdwg.mxu0
    %v642 = vld [vmem:[%s4 + $0x5] sm:$0x1]
    %v643 = vperm.slane %v642, 0
    %v645 = vsel %vm66, %v602, 0
    %v648 = vsel %vm66, %v603, 0
    %v651 = vsel %vm176, %v640, 0
    %653 = vmatpush.msra.mxu0 0.0
    %654 = vmatpush.msra.mxu0 0.0
    %655 = vmatpush.msra.mxu0 0.0
    %656 = vmatpush.msra.mxu0 0.0
    %657 = vmatpush.msra.mxu0 0.0
    %658 = vmatpush.msra.mxu0 0.0
    %659 = vmatpush.msra.mxu0 0.0
    %660 = vmatpush.msra.mxu0 0.0
    %661 = vmatpush.msra.mxu0 0.0
    %662 = vmatpush.msra.mxu0 0.0
    %663 = vmatpush.msra.mxu0 0.0
    %664 = vmatpush.msra.mxu0 0.0
    %665 = vmatpush.msra.mxu0 0.0
    %666 = vmatpush.msra.mxu0 0.0
    %667 = vmatpush.msra.mxu0 %v651
    %668 = vmatpush.msra.mxu0 %v637
    %669 = vmatmul.f32.gmra.mxu0 %v645
    %v670 = vpop.f32.mrf.mxu0
    %v671 = vadd.f32 %v643, %v670
    %672 = vmatmul.f32.gmra.mxu0 %v648
    %v673 = vpop.f32.mrf.mxu0
    %v674 = vadd.f32 %v643, %v673
    %675 = vdwg.mxu0
    %v676 = vmax.f32 %v671, 0.0
    %v677 = vmax.f32 %v674, 0.0
    %v678 = vld [vmem:[%s4 + $0x8] sm:$0x1]
    %v679 = vperm.slane %v678, 0
    %v680 = vmul.f32 %v676, %v679
    %v681 = vmul.f32 %v677, %v679
    %v682 = vsel %vm138, %v680, 0.0
    %683 = vadd.xlane.f32.xlu0 %v682
    %v684 = vpop.xlane.xlu0 %683
    %v685 = vsel %vm484, %v681, 0.0
    %686 = vadd.xlane.f32.xlu0 %v685
    %v687 = vpop.xlane.xlu0 %686
    %v688 = vtanh.pop %v684
    %v689 = vtanh.pop %v687
    %v690 = vmul.f32 %v50, %v688
    %v691 = vmul.f32 %v51, %v689
    %v692 = vsel %vm66, %v690, 0.0
    %v693 = vsel %vm68, %v691, 0.0
    %v694 = vadd.f32 %v692, %v693
    %v695 = vrot.slane %v694, 4
    %v696 = vadd.f32 %v694, %v695
    %v697 = vrot.slane %v696, 2
    %v698 = vadd.f32 %v696, %v697
    %v699 = vrot.slane %v698, 1
    %v700 = vadd.f32 %v698, %v699
    %v701 = vmul.f32 %v79, %v550
    %v702 = vmul.f32 %v80, %v550
    %v703 = vsel %vm66, %v701, 0.0
    %704 = vadd.xlane.f32.xlu0 %v703
    %v705 = vpop.xlane.xlu0 %704
    %v706 = vsel %vm68, %v702, 0.0
    %707 = vadd.xlane.f32.xlu0 %v706
    %v708 = vpop.xlane.xlu0 %707
    %v709 = vmul.f32 %v705, 0.6
    %v710 = vmul.f32 %v708, 0.6
    %v711 = vceil.f32 %v709
    %v712 = vceil.f32 %v710
    %vm713 = vcmp.gt.f32.partialorder %v700, %v688
    %vm714 = vcmp.gt.f32.partialorder %v700, %v689
    %vm715 = vcmp.eq.f32.partialorder %v700, %v688
    %vm716 = vcmp.eq.f32.partialorder %v700, %v689
    %vm717 = vmand %vm715, %vm52
    %vm718 = vmand %vm716, %vm53
    %vm719 = vmor %vm713, %vm717
    %vm720 = vmor %vm714, %vm718
    %v721 = vsel %vm719, 1.0, 0.0
    %v722 = vsel %vm720, 1.0, 0.0
    %v723 = vmul.f32 %v701, %v534
    %v724 = vmul.f32 %v702, %v535
    %v725 = vmul.f32 %v723, %v721
    %v726 = vmul.f32 %v724, %v722
    %v727 = vsel %vm66, %v725, 0.0
    %728 = vadd.xlane.f32.xlu0 %v727
    %v729 = vpop.xlane.xlu0 %728
    %v730 = vsel %vm68, %v726, 0.0
    %731 = vadd.xlane.f32.xlu0 %v730
    %v732 = vpop.xlane.xlu0 %731
    %vm733 = vcmp.gt.f32.partialorder %v534, 0.0
    %vm734 = vcmp.gt.f32.partialorder %v535, 0.0
    %vm735 = vcmp.lt.f32.partialorder %v729, %v711
    %vm736 = vcmp.lt.f32.partialorder %v732, %v712
    %vm737 = vmand %vm733, %vm735
    %vm738 = vmand %vm734, %vm736
    %v739 = vsel %vm737, 1.0, 0.0
    %v740 = vsel %vm738, 1.0, 0.0
    %v741 = vmul.f32 %v688, %v739
    %v742 = vmul.f32 %v689, %v740
    %v743 = vmul.f32 %v676, %v741
    %v744 = vmul.f32 %v677, %v742
    %v745 = vmul.f32 %v50, %v739
    %v746 = vmul.f32 %v51, %v740
    %v747 = vsel %vm66, %v745, 0.0
    %v748 = vsel %vm68, %v746, 0.0
    %v749 = vadd.f32 %v747, %v748
    %v750 = vrot.slane %v749, 4
    %v751 = vadd.f32 %v749, %v750
    %v752 = vrot.slane %v751, 2
    %v753 = vadd.f32 %v751, %v752
    %v754 = vrot.slane %v753, 1
    %v755 = vadd.f32 %v753, %v754
    %v756 = vmul.f32 %v739, %v755
    %v757 = vmul.f32 %v740, %v755
    %v758 = vmul.f32 %v39, %v756
    %v759 = vmul.f32 %v40, %v757
    %v760 = vadd.f32 %v758, %v745
    %v761 = vadd.f32 %v759, %v746
    %v762 = vsel %vm66, %v760, 0.0
    %763 = vadd.xlane.f32.xlu0 %v762
    %v764 = vpop.xlane.xlu0 %763
    %v765 = vsel %vm68, %v761, 0.0
    %766 = vadd.xlane.f32.xlu0 %v765
    %v767 = vpop.xlane.xlu0 %766
    %vm768 = vcmp.gt.f32.partialorder %v764, 0.0
    %vm769 = vcmp.gt.f32.partialorder %v767, 0.0
    %v770 = vmax.f32 %v764, 1.0
    %v771 = vmax.f32 %v767, 1.0
    %v772 = vrsqrt.pop %v770
    %v773 = vmul.f32 %v772, %v770
    %v774 = vmul.f32 %v773, %v772
    %v775 = vmul.f32 0.5, %v774
    %v776 = vsub.f32 1.5, %v775
    %v777 = vmul.f32 %v772, %v776
    %vm778 = vweird.f32 %v770
    %vm779 = vweird.f32 %v772
    %vm780 = vmor %vm778, %vm779
    %v781 = vsel %vm780, %v772, %v777
    %v782 = vrsqrt.pop %v771
    %v783 = vmul.f32 %v782, %v771
    %v784 = vmul.f32 %v783, %v782
    %v785 = vmul.f32 0.5, %v784
    %v786 = vsub.f32 1.5, %v785
    %v787 = vmul.f32 %v782, %v786
    %vm788 = vweird.f32 %v771
    %vm789 = vweird.f32 %v782
    %vm790 = vmor %vm788, %vm789
    %v791 = vsel %vm790, %v782, %v787
    %v792 = vsel %vm768, %v781, 0.0
    %v793 = vsel %vm769, %v791, 0.0
    %v794 = vmul.f32 %v792, %v760
    %v795 = vmul.f32 %v793, %v761
    %v796 = vmul.f32 %v50, %v792
    %v797 = vmul.f32 %v51, %v793
    %v798 = vsel %vm66, %v796, 0.0
    %v799 = vsel %vm68, %v797, 0.0
    %v800 = vadd.f32 %v798, %v799
    %v801 = vrot.slane %v800, 4
    %v802 = vadd.f32 %v800, %v801
    %v803 = vrot.slane %v802, 2
    %v804 = vadd.f32 %v802, %v803
    %v805 = vrot.slane %v804, 1
    %v806 = vadd.f32 %v804, %v805
    %v807 = vmul.f32 %v794, %v806
    %v808 = vmul.f32 %v795, %v806
    %s809 = scalar_lea.vmem [#allocation2], 384
    %v810 = vld [vmem:[%s809] sm:$0xff]
    %v811 = vld [vmem:[%s809 + $0x8] sm:$0xff]
    %v812 = vld [vmem:[%s809 + $0x10] sm:$0xff]
    %v813 = vld [vmem:[%s809 + $0x18] sm:$0xff]
    %v814 = vld [vmem:[%s809 + $0x20] sm:$0xff]
    %v815 = vld [vmem:[%s809 + $0x28] sm:$0xff]
    %v816 = vld [vmem:[%s809 + $0x30] sm:$0xff]
    %v817 = vld [vmem:[%s809 + $0x38] sm:$0xff]
    %v819 = vsel %vm138, %v743, 0
    %v822 = vsel %vm138, %v744, 0
    %824 = vmatpush.msra.mxu0 0.0
    %825 = vmatpush.msra.mxu0 0.0
    %826 = vmatpush.msra.mxu0 0.0
    %827 = vmatpush.msra.mxu0 0.0
    %828 = vmatpush.msra.mxu0 0.0
    %829 = vmatpush.msra.mxu0 0.0
    %830 = vmatpush.msra.mxu0 0.0
    %831 = vmatpush.msra.mxu0 0.0
    %832 = vmatpush.msra.mxu0 %v817
    %833 = vmatpush.msra.mxu0 %v816
    %834 = vmatpush.msra.mxu0 %v815
    %835 = vmatpush.msra.mxu0 %v814
    %836 = vmatpush.msra.mxu0 %v813
    %837 = vmatpush.msra.mxu0 %v812
    %838 = vmatpush.msra.mxu0 %v811
    %839 = vmatpush.msra.mxu0 %v810
    %840 = vmatmul.f32.gmra.mxu0 %v819
    %v841 = vpop.f32.mrf.mxu0
    %v842 = vadd.f32 0.0, %v841
    %843 = vmatmul.f32.gmra.mxu0 %v822
    %v844 = vpop.f32.mrf.mxu0
    %v845 = vadd.f32 0.0, %v844
    %846 = vdwg.mxu0
    %v847 = vld [vmem:[%s4 + $0x6] sm:$0x1]
    %v848 = vperm.slane %v847, 0
    %v850 = vsel %vm66, %v807, 0
    %v853 = vsel %vm66, %v808, 0
    %v856 = vsel %vm176, %v845, 0
    %858 = vmatpush.msra.mxu0 0.0
    %859 = vmatpush.msra.mxu0 0.0
    %860 = vmatpush.msra.mxu0 0.0
    %861 = vmatpush.msra.mxu0 0.0
    %862 = vmatpush.msra.mxu0 0.0
    %863 = vmatpush.msra.mxu0 0.0
    %864 = vmatpush.msra.mxu0 0.0
    %865 = vmatpush.msra.mxu0 0.0
    %866 = vmatpush.msra.mxu0 0.0
    %867 = vmatpush.msra.mxu0 0.0
    %868 = vmatpush.msra.mxu0 0.0
    %869 = vmatpush.msra.mxu0 0.0
    %870 = vmatpush.msra.mxu0 0.0
    %871 = vmatpush.msra.mxu0 0.0
    %872 = vmatpush.msra.mxu0 %v856
    %873 = vmatpush.msra.mxu0 %v842
    %874 = vmatmul.f32.gmra.mxu0 %v850
    %v875 = vpop.f32.mrf.mxu0
    %v876 = vadd.f32 %v848, %v875
    %877 = vmatmul.f32.gmra.mxu0 %v853
    %v878 = vpop.f32.mrf.mxu0
    %v879 = vadd.f32 %v848, %v878
    %880 = vdwg.mxu0
    %v881 = vmax.f32 %v876, 0.0
    %v882 = vmax.f32 %v879, 0.0
    %v883 = vld [vmem:[%s4 + $0x9] sm:$0x1]
    %v884 = vperm.slane %v883, 0
    %v885 = vmul.f32 %v881, %v884
    %v886 = vmul.f32 %v882, %v884
    %v887 = vsel %vm138, %v885, 0.0
    %888 = vadd.xlane.f32.xlu0 %v887
    %v889 = vpop.xlane.xlu0 %888
    %v890 = vsel %vm484, %v886, 0.0
    %891 = vadd.xlane.f32.xlu0 %v890
    %v892 = vpop.xlane.xlu0 %891
    %v893 = vtanh.pop %v889
    %v894 = vtanh.pop %v892
    %v895 = vmul.f32 %v50, %v893
    %v896 = vmul.f32 %v51, %v894
    %v897 = vsel %vm66, %v895, 0.0
    %v898 = vsel %vm68, %v896, 0.0
    %v899 = vadd.f32 %v897, %v898
    %v900 = vrot.slane %v899, 4
    %v901 = vadd.f32 %v899, %v900
    %v902 = vrot.slane %v901, 2
    %v903 = vadd.f32 %v901, %v902
    %v904 = vrot.slane %v903, 1
    %v905 = vadd.f32 %v903, %v904
    %v906 = vmul.f32 %v79, %v755
    %v907 = vmul.f32 %v80, %v755
    %v908 = vsel %vm66, %v906, 0.0
    %909 = vadd.xlane.f32.xlu0 %v908
    %v910 = vpop.xlane.xlu0 %909
    %v911 = vsel %vm68, %v907, 0.0
    %912 = vadd.xlane.f32.xlu0 %v911
    %v913 = vpop.xlane.xlu0 %912
    %v914 = vmul.f32 %v910, 0.6
    %v915 = vmul.f32 %v913, 0.6
    %v916 = vceil.f32 %v914
    %v917 = vceil.f32 %v915
    %vm918 = vcmp.gt.f32.partialorder %v905, %v893
    %vm919 = vcmp.gt.f32.partialorder %v905, %v894
    %vm920 = vcmp.eq.f32.partialorder %v905, %v893
    %vm921 = vcmp.eq.f32.partialorder %v905, %v894
    %vm922 = vmand %vm920, %vm52
    %vm923 = vmand %vm921, %vm53
    %vm924 = vmor %vm918, %vm922
    %vm925 = vmor %vm919, %vm923
    %v926 = vsel %vm924, 1.0, 0.0
    %v927 = vsel %vm925, 1.0, 0.0
    %v928 = vmul.f32 %v906, %v739
    %v929 = vmul.f32 %v907, %v740
    %v930 = vmul.f32 %v928, %v926
    %v931 = vmul.f32 %v929, %v927
    %v932 = vsel %vm66, %v930, 0.0
    %933 = vadd.xlane.f32.xlu0 %v932
    %v934 = vpop.xlane.xlu0 %933
    %v935 = vsel %vm68, %v931, 0.0
    %936 = vadd.xlane.f32.xlu0 %v935
    %v937 = vpop.xlane.xlu0 %936
    %vm938 = vcmp.gt.f32.partialorder %v739, 0.0
    %vm939 = vcmp.gt.f32.partialorder %v740, 0.0
    %vm940 = vcmp.lt.f32.partialorder %v934, %v916
    %vm941 = vcmp.lt.f32.partialorder %v937, %v917
    %vm942 = vmand %vm938, %vm940
    %vm943 = vmand %vm939, %vm941
    %v944 = vsel %vm942, 1.0, 0.0
    %v945 = vsel %vm943, 1.0, 0.0
    %v946 = vmul.f32 %v893, %v944
    %v947 = vmul.f32 %v894, %v945
    %v948 = vmul.f32 %v881, %v946
    %v949 = vmul.f32 %v882, %v947
    %vm950 = vcmp.eq.f32.partialorder %v41, 0.0
    %vm951 = vcmp.eq.f32.partialorder %v42, 0.0
    %vm952 = vcmp.gt.f32.partialorder %v944, 0.0
    %vm953 = vcmp.gt.f32.partialorder %v945, 0.0
    %vm954 = vmand %vm950, %vm952
    %vm955 = vmand %vm951, %vm953
    %v956 = vsel %vm954, 1, 0
    %v957 = vsel %vm955, 1, 0
    %958 = vset.pattern.permute.xlu0 0
    %959 = vperm.xlu0 %958, %v956
    %v960 = vpop.permute.xlu0 %959
    %961 = vset.pattern.permute.xlu0 0
    %962 = vperm.xlu0 %961, %v957
    %v963 = vpop.permute.xlu0 %962
    %vm964 = vcmp.eq.s32.totalorder %v960, 1
    %vm965 = vcmp.eq.s32.totalorder %v963, 1
    %v966 = vsel %vm964, %v948, -3e+38
    %v967 = vsel %vm965, %v949, -3e+38
    %v968 = vsel %vm138, %v966, -inf
    %v969 = vsel %vm484, %v967, -inf
    %v970 = vmax.f32 %v968, %v969
    %v971 = vrot.slane %v970, 4
    %v972 = vmax.f32 %v970, %v971
    %v973 = vrot.slane %v972, 2
    %v974 = vmax.f32 %v972, %v973
    %v975 = vrot.slane %v974, 1
    %v976 = vmax.f32 %v974, %v975
    %vm977 = vcmp.eq.f32.partialorder %v41, 1.0
    %vm978 = vcmp.eq.f32.partialorder %v42, 1.0
    %vm979 = vmand %vm977, %vm952
    %vm980 = vmand %vm978, %vm953
    %v981 = vsel %vm979, 1, 0
    %v982 = vsel %vm980, 1, 0
    %983 = vset.pattern.permute.xlu0 0
    %984 = vperm.xlu0 %983, %v981
    %v985 = vpop.permute.xlu0 %984
    %986 = vset.pattern.permute.xlu0 0
    %987 = vperm.xlu0 %986, %v982
    %v988 = vpop.permute.xlu0 %987
    %vm989 = vcmp.eq.s32.totalorder %v985, 1
    %vm990 = vcmp.eq.s32.totalorder %v988, 1
    %v991 = vsel %vm989, %v948, -3e+38
    %v992 = vsel %vm990, %v949, -3e+38
    %v993 = vsel %vm138, %v991, -inf
    %v994 = vsel %vm484, %v992, -inf
    %v995 = vmax.f32 %v993, %v994
    %v996 = vrot.slane %v995, 4
    %v997 = vmax.f32 %v995, %v996
    %v998 = vrot.slane %v997, 2
    %v999 = vmax.f32 %v997, %v998
    %v1000 = vrot.slane %v999, 1
    %v1001 = vmax.f32 %v999, %v1000
    %vm1002 = vcmask 1040384
    %v1003 = vsel %vm1002, %v976, %v1001
    %s1004 = scalar_lea.vmem [#allocation2], 448
    %v1005 = vld [vmem:[%s1004] sm:$0xff]
    %v1006 = vld [vmem:[%s1004 + $0x8] sm:$0xff]
    %v1007 = vld [vmem:[%s1004 + $0x10] sm:$0xff]
    %v1008 = vld [vmem:[%s1004 + $0x18] sm:$0xff]
    %v1009 = vld [vmem:[%s1004 + $0x20] sm:$0xff]
    %v1010 = vld [vmem:[%s1004 + $0x28] sm:$0xff]
    %v1011 = vld [vmem:[%s1004 + $0x30] sm:$0xff]
    %v1012 = vld [vmem:[%s1004 + $0x38] sm:$0xff]
    %v1013 = vld [vmem:[%s4 + $0xa] sm:$0x1]
    %v1014 = vperm.slane %v1013, 0
    %v1016 = vsel %vm138, %v1003, 0
    %1018 = vmatpush.msra.mxu0 0.0
    %1019 = vmatpush.msra.mxu0 0.0
    %1020 = vmatpush.msra.mxu0 0.0
    %1021 = vmatpush.msra.mxu0 0.0
    %1022 = vmatpush.msra.mxu0 0.0
    %1023 = vmatpush.msra.mxu0 0.0
    %1024 = vmatpush.msra.mxu0 0.0
    %1025 = vmatpush.msra.mxu0 0.0
    %1026 = vmatpush.msra.mxu0 %v1012
    %1027 = vmatpush.msra.mxu0 %v1011
    %1028 = vmatpush.msra.mxu0 %v1010
    %1029 = vmatpush.msra.mxu0 %v1009
    %1030 = vmatpush.msra.mxu0 %v1008
    %1031 = vmatpush.msra.mxu0 %v1007
    %1032 = vmatpush.msra.mxu0 %v1006
    %1033 = vmatpush.msra.mxu0 %v1005
    %1034 = vmatmul.f32.gmra.mxu0 %v1016
    %v1035 = vpop.f32.mrf.mxu0
    %v1036 = vadd.f32 %v1014, %v1035
    %1037 = vdwg.mxu0
    %v1038 = vmax.f32 %v1036, 0.0
    %s1039 = scalar_lea.vmem [#allocation2], 512
    %v1040 = vld [vmem:[%s1039] sm:$0xff]
    %v1041 = vld [vmem:[%s1039 + $0x8] sm:$0xff]
    %v1042 = vld [vmem:[%s1039 + $0x10] sm:$0xff]
    %v1043 = vld [vmem:[%s1039 + $0x18] sm:$0xff]
    %v1044 = vld [vmem:[%s1039 + $0x20] sm:$0xff]
    %v1045 = vld [vmem:[%s1039 + $0x28] sm:$0xff]
    %v1046 = vld [vmem:[%s1039 + $0x30] sm:$0xff]
    %v1047 = vld [vmem:[%s1039 + $0x38] sm:$0xff]
    %v1048 = vld [vmem:[%s4 + $0xb] sm:$0x1]
    %v1049 = vperm.slane %v1048, 0
    %v1051 = vsel %vm138, %v1038, 0
    %1053 = vmatpush.msra.mxu0 0.0
    %1054 = vmatpush.msra.mxu0 0.0
    %1055 = vmatpush.msra.mxu0 0.0
    %1056 = vmatpush.msra.mxu0 0.0
    %1057 = vmatpush.msra.mxu0 0.0
    %1058 = vmatpush.msra.mxu0 0.0
    %1059 = vmatpush.msra.mxu0 0.0
    %1060 = vmatpush.msra.mxu0 0.0
    %1061 = vmatpush.msra.mxu0 %v1047
    %1062 = vmatpush.msra.mxu0 %v1046
    %1063 = vmatpush.msra.mxu0 %v1045
    %1064 = vmatpush.msra.mxu0 %v1044
    %1065 = vmatpush.msra.mxu0 %v1043
    %1066 = vmatpush.msra.mxu0 %v1042
    %1067 = vmatpush.msra.mxu0 %v1041
    %1068 = vmatpush.msra.mxu0 %v1040
    %1069 = vmatmul.f32.gmra.mxu0 %v1051
    %v1070 = vpop.f32.mrf.mxu0
    %v1071 = vadd.f32 %v1049, %v1070
    %1072 = vdwg.mxu0
    %v1073 = vmax.f32 %v1071, 0.0
    %s1074 = scalar_lea.vmem [#allocation2], 576
    %v1075 = vld [vmem:[%s1074] sm:$0xff]
    %v1076 = vld [vmem:[%s1074 + $0x8] sm:$0xff]
    %v1077 = vld [vmem:[%s1074 + $0x10] sm:$0xff]
    %v1078 = vld [vmem:[%s1074 + $0x18] sm:$0xff]
    %v1079 = vld [vmem:[%s1074 + $0x20] sm:$0xff]
    %v1080 = vld [vmem:[%s1074 + $0x28] sm:$0xff]
    %v1081 = vld [vmem:[%s1074 + $0x30] sm:$0xff]
    %v1082 = vld [vmem:[%s1074 + $0x38] sm:$0xff]
    %v1083 = vld [vmem:[%s4 + $0xc] sm:$0x1]
    %v1084 = vperm.slane %v1083, 0
    %v1086 = vsel %vm138, %v1073, 0
    %1088 = vmatpush.msra.mxu0 0.0
    %1089 = vmatpush.msra.mxu0 0.0
    %1090 = vmatpush.msra.mxu0 0.0
    %1091 = vmatpush.msra.mxu0 0.0
    %1092 = vmatpush.msra.mxu0 0.0
    %1093 = vmatpush.msra.mxu0 0.0
    %1094 = vmatpush.msra.mxu0 0.0
    %1095 = vmatpush.msra.mxu0 0.0
    %1096 = vmatpush.msra.mxu0 %v1082
    %1097 = vmatpush.msra.mxu0 %v1081
    %1098 = vmatpush.msra.mxu0 %v1080
    %1099 = vmatpush.msra.mxu0 %v1079
    %1100 = vmatpush.msra.mxu0 %v1078
    %1101 = vmatpush.msra.mxu0 %v1077
    %1102 = vmatpush.msra.mxu0 %v1076
    %1103 = vmatpush.msra.mxu0 %v1075
    %1104 = vmatmul.f32.gmra.mxu0 %v1086
    %v1105 = vpop.f32.mrf.mxu0
    %v1106 = vadd.f32 %v1084, %v1105
    %1107 = vdwg.mxu0
    %vm1108 = vcmask 9216
    %v1109 = vsel %vm1108, %v1106, -inf
    %1110 = vmax.xlane.f32.xlu0 %v1109
    %v1111 = vpop.xlane.xlu0 %1110
    %v1112 = vsub.f32 %v1106, %v1111
    %v1113 = vmul.f32 %v1112, 1.442695
    %v1114 = vpow.pop %v1113
    %v1115 = vsel %vm1108, %v1114, 0.0
    %1116 = vadd.xlane.f32.xlu0 %v1115
    %v1117 = vpop.xlane.xlu0 %1116
    %v1118 = vlog2.pop %v1117
    %v1119 = vmul.f32 %v1118, 0.6931472
    %v1120 = vsub.f32 %v1112, %v1119
    %1121 = vst.msk [vmem:[#allocation5] sm:$0x3] %vm1108, %v1120
    // Predicated region
    $region26: #{model_forward.1} parent=1 // pred_check
      _
    $region27: #{model_forward.1} parent=1 // pred_check_branch
      %1123 = sbr.rel (0) target = $region29
    $region28: #{model_forward.1} parent=1 // pred_region
      %1125 = vsyncadd [#allocation4], 0
      %s1127 = sshll.u32 [#allocation5], 4
      %s1128 = int_to_ptr.vmem [resolvable:$true] %s1127
      %s1129 = sshll.u32 %s5, 4
      %s1130 = int_to_ptr.hbm [resolvable:$true] %s1129
      %1132 = dma.vmem_to_hbm [thread:$0]  %s1128, 32, %s1130, [#allocation4]
    $region29: #{model_forward.1} parent=1 // pred_fallthru
      _
    // Predicated region
    $region30: #{model_forward.1} parent=1 // pred_check
      _
    $region31: #{model_forward.1} parent=1 // pred_check_branch
      %1134 = sbr.rel (0) target = $region33
    $region32: #{model_forward.1} parent=1 // pred_region
      %1136 = dma.done [#allocation4], 32
    $region33: #{model_forward.1} parent=1 // pred_fallthru
      _
    %1137 = vsyncpa [#allocation3], 1
    %1138 = vsyncpa [#allocation4], 1

</llo_original>
